<compile_context>
chip_gen: v7x
topology: tpu7x:2x2x1
jax: 0.10.0
libtpu: 0.0.40
codegen_flags: <defaults>
</compile_context>

<pallas_src>
import jax
import jax.numpy as jnp
from jax.experimental import pallas as pl
from jax.experimental.pallas import tpu as pltpu


def _bilstm_head_kernel(tok_ref,                 # SMEM (B, T) int32 token ids
                        tab_f_ref, tab_b_ref,    # VMEM (V, 8H) f32 fused input-projection tables
                        whh_ref,                 # VMEM (2H, 8H) bf16 block-diagonal recurrent weights
                        fc1_w_ref, fc1_b_ref,    # (4H, H) bf16, (1, H) f32
                        fc2_w_ref, fc2_b_ref,    # (H, 1) f32,  (1, 1) f32
                        out_ref,                 # (B, 1) f32
                        xp_ref):                 # VMEM scratch (T*B, 8H) f32
    B, T = tok_ref.shape
    H2 = whh_ref.shape[0]                        # 2H = 128: fused [fwd | bwd] state width

    # ---- In-kernel embedding gather + input projection ------------------------------
    # tab_*[v] already holds emb[v] @ W_ih^T + (b_ih + b_hh) with that direction's gate
    # columns at their final interleaved positions (zeros elsewhere), so one add fuses
    # fwd step t with bwd step T-1-t.  All indices below are static except the table row.
    for t in range(T):
        for b in range(B):
            tf = tok_ref[b, t]                   # scalar read from SMEM
            tb = tok_ref[b, T - 1 - t]
            r = t * B + b
            xp_ref[r:r + 1, :] = (tab_f_ref[pl.ds(tf, 1), :] +
                                  tab_b_ref[pl.ds(tb, 1), :])

    # ---- Fused fwd/bwd recurrence (fully unrolled; T is small & static) -------------
    # Per step: ONE (B,2H)x(2H,8H) bf16 MXU matmul covers both directions; every gate
    # slice is a 128-lane aligned block.  Gate order: [i_f|i_b  f_f|f_b  o_f|o_b  g_f|g_b].
    # TODO(synk): verify in the bundle dump that Mosaic keeps W_hh staged in the MXU
    # across the unrolled loop; if not, drive it explicitly with pltpu.matmul_push_rhs.
    h = jnp.zeros((B, H2), jnp.float32)
    c = jnp.zeros((B, H2), jnp.float32)
    s = jnp.zeros((B, H2), jnp.float32)
    m = jnp.zeros((B, H2), jnp.float32)

    for t in range(T):
        gates = (jnp.dot(h.astype(whh_ref.dtype), whh_ref[...],
                         preferred_element_type=jnp.float32)
                 + xp_ref[t * B:(t + 1) * B, :])                 # (B, 8H)
        sig = jax.nn.sigmoid(gates[:, 0:3 * H2])                 # one EUP pass over i, f, o
        i_g = sig[:, 0 * H2:1 * H2]
        f_g = sig[:, 1 * H2:2 * H2]
        o_g = sig[:, 2 * H2:3 * H2]
        g_g = jnp.tanh(gates[:, 3 * H2:4 * H2])
        c = f_g * c + i_g * g_g
        h = o_g * jnp.tanh(c)
        s = s + h                                                # running sum -> mean pool
        m = h if t == 0 else jnp.maximum(m, h)                   # running max -> max pool

    avg = s * (1.0 / T)                          # (B, 2H) = [avg_f | avg_b]
    feat = jnp.concatenate([avg, m], axis=1)     # (B, 4H) = [avg_f|avg_b|max_f|max_b]

    hid = jnp.dot(feat.astype(jnp.bfloat16), fc1_w_ref[...],
                  preferred_element_type=jnp.float32) + fc1_b_ref[...]
    hid = jnp.maximum(hid, 0.0)                  # ReLU; dropout(p=0.0) is identity in eval
    logit = jnp.dot(hid, fc2_w_ref[...], preferred_element_type=jnp.float32) + fc2_b_ref[...]
    out_ref[...] = jax.nn.sigmoid(logit)


def prepare_params(params):
    """One-time repack of PyTorch-layout weights into kernel layout (off the call path)."""
    H = params["w_hh_f"].shape[1]                # PyTorch w_hh: (4H, H)
    V, _ = params["embedding"].shape
    emb = params["embedding"].astype(jnp.float32)
    perm = [0, 1, 3, 2]                          # PyTorch gate order (i,f,g,o) -> kernel (i,f,o,g)

    def wide_table(w_ih, b_ih, b_hh, direction):
        # emb @ W_ih^T + (b_ih + b_hh), columns placed at gate-major / direction-interleaved slots.
        proj = emb @ w_ih.T.astype(jnp.float32) + (b_ih + b_hh)[None, :].astype(jnp.float32)
        proj = proj.reshape(V, 4, H)[:, perm, :]                            # (V, 4, H)
        wide = jnp.zeros((V, 4, 2, H), jnp.float32).at[:, :, direction, :].set(proj)
        return wide.reshape(V, 8 * H)

    def wide_whh(w_hh, direction):
        blocks = w_hh.T.astype(jnp.float32).reshape(H, 4, H)[:, perm, :]    # (H, 4, H)
        wide = jnp.zeros((H, 4, 2, H), jnp.float32).at[:, :, direction, :].set(blocks)
        return wide.reshape(H, 8 * H)

    whh = jnp.concatenate([wide_whh(params["w_hh_f"], 0),                   # fwd-h rows
                           wide_whh(params["w_hh_b"], 1)], axis=0)          # bwd-h rows
    return {
        "tab_f": wide_table(params["w_ih_f"], params["b_ih_f"], params["b_hh_f"], 0),
        "tab_b": wide_table(params["w_ih_b"], params["b_ih_b"], params["b_hh_b"], 1),
        "whh": whh.astype(jnp.bfloat16),                                    # bf16 MXU path, f32 accum
        "fc1_wT": params["fc1_w"].T.astype(jnp.bfloat16),                   # (4H, H)
        "fc1_b": params["fc1_b"][None, :].astype(jnp.float32),
        "fc2_wT": params["fc2_w"].T.astype(jnp.float32),                    # (H, 1)
        "fc2_b": params["fc2_b"][None, :].astype(jnp.float32),
    }


@jax.jit
def covid_bilstm_forward(x_tokens, packed):
    """x_tokens: (B, T) int32 token ids; packed: output of prepare_params.
    Returns (probs (B, 1), None).  Handles arbitrary B — batching more sequences per
    call is essentially free (same MXU cadence) and is the main throughput lever."""
    B, T = x_tokens.shape
    H2 = packed["whh"].shape[0]
    H = H2 // 2

    smem = pl.BlockSpec(memory_space=pltpu.MemorySpace.SMEM)
    vmem = pl.BlockSpec(memory_space=pltpu.MemorySpace.VMEM)
    # TODO(synk): if batch grows to >=256 rows, add a batch-tile grid axis with
    # dimension_semantics=("parallel",) so v7x's two TensorCores split it, and budget
    # VMEM against v7x's 64 MiB (vmem_limit_bytes) when scaling V/T/H.
    probs = pl.pallas_call(
        _bilstm_head_kernel,
        out_shape=jax.ShapeDtypeStruct((B, 1), jnp.float32),
        in_specs=[smem, vmem, vmem, vmem, vmem, vmem, vmem, vmem],
        out_specs=vmem,
        scratch_shapes=[pltpu.VMEM((T * B, 8 * H), jnp.float32)],
    )(x_tokens,
      packed["tab_f"], packed["tab_b"], packed["whh"],
      packed["fc1_wT"], packed["fc1_b"], packed["fc2_wT"], packed["fc2_b"])
    return probs, None


def init_params(key, vocab_size, embedding_dim, hidden_size):
    """Deterministic synthetic parameters matching the PyTorch module shapes."""
    ks = jax.random.split(key, 12)
    s = 0.1
    H, E = hidden_size, embedding_dim
    return {
        "embedding": s * jax.random.normal(ks[0], (vocab_size, E), jnp.float32),
        # PyTorch LSTM layout: weight_ih (4H, E), weight_hh (4H, H), biases (4H,), gate order (i, f, g, o)
        "w_ih_f": s * jax.random.normal(ks[1], (4 * H, E), jnp.float32),
        "w_hh_f": s * jax.random.normal(ks[2], (4 * H, H), jnp.float32),
        "b_ih_f": s * jax.random.normal(ks[3], (4 * H,), jnp.float32),
        "b_hh_f": s * jax.random.normal(ks[4], (4 * H,), jnp.float32),
        "w_ih_b": s * jax.random.normal(ks[5], (4 * H, E), jnp.float32),
        "w_hh_b": s * jax.random.normal(ks[6], (4 * H, H), jnp.float32),
        "b_ih_b": s * jax.random.normal(ks[7], (4 * H,), jnp.float32),
        "b_hh_b": s * jax.random.normal(ks[8], (4 * H,), jnp.float32),
        # fc1: Linear(4H -> H), fc2: Linear(H -> 1)
        "fc1_w": s * jax.random.normal(ks[9], (H, 4 * H), jnp.float32),
        "fc1_b": s * jax.random.normal(ks[10], (H,), jnp.float32),
        "fc2_w": s * jax.random.normal(ks[11], (1, H), jnp.float32),
        "fc2_b": jnp.zeros((1,), jnp.float32),
    }


if __name__ == "__main__":
    vocab_size = 100
    embedding_dim = 32
    hidden_size = 64
    max_seq_length = 8     # T
    batch = 2              # B

    key = jax.random.PRNGKey(0)
    k_tok, k_par = jax.random.split(key)
    params = init_params(k_par, vocab_size, embedding_dim, hidden_size)
    packed = prepare_params(params)            # one-time weight repack, NOT on the per-call path
    packed = jax.block_until_ready(packed)

    x_tokens = jax.random.randint(k_tok, (batch, max_seq_length), 0, vocab_size,
                                  dtype=jnp.int32)

    probs, _ = covid_bilstm_forward(x_tokens, packed)
    probs = jax.block_until_ready(probs)
    assert probs.shape == (batch, 1)
    assert bool(jnp.all(jnp.isfinite(probs)))
    assert bool(jnp.all((probs >= 0.0) & (probs <= 1.0)))
    print("KERNEL_OK")
</pallas_src>

<mosaic_0001>
module attributes {stable_mosaic.version = 11 : i64} {
  func.func @_bilstm_head_kernel(%arg0: memref<2x8xi32, #tpu.memory_space<smem>>, %arg1: memref<100x512xf32, #tpu.memory_space<vmem>>, %arg2: memref<100x512xf32, #tpu.memory_space<vmem>>, %arg3: memref<128x512xbf16, #tpu.memory_space<vmem>>, %arg4: memref<256x64xbf16, #tpu.memory_space<vmem>>, %arg5: memref<1x64xf32, #tpu.memory_space<vmem>>, %arg6: memref<64x1xf32, #tpu.memory_space<vmem>>, %arg7: memref<1x1xf32, #tpu.memory_space<vmem>>, %arg8: memref<2x1xf32, #tpu.memory_space<vmem>>, %arg9: memref<16x512xf32, #tpu.memory_space<vmem>>) attributes {dimension_semantics = [], scalar_prefetch = 0 : i64, scratch_operands = 1 : i64, tpu.core_type = #tpu.core_type<tc>} {
    %c0 = arith.constant 0 : index
    %c0_0 = arith.constant 0 : index
    %0 = memref.load %arg0[%c0, %c0_0] : memref<2x8xi32, #tpu.memory_space<smem>>
    %c0_1 = arith.constant 0 : index
    %c7 = arith.constant 7 : index
    %1 = memref.load %arg0[%c0_1, %c7] : memref<2x8xi32, #tpu.memory_space<smem>>
    %2 = arith.index_cast %0 : i32 to index
    %c0_2 = arith.constant 0 : index
    %3 = vector.load %arg1[%2, %c0_2] : memref<100x512xf32, #tpu.memory_space<vmem>>, vector<1x512xf32>
    %4 = arith.index_cast %1 : i32 to index
    %c0_3 = arith.constant 0 : index
    %5 = vector.load %arg2[%4, %c0_3] : memref<100x512xf32, #tpu.memory_space<vmem>>, vector<1x512xf32>
    %6 = arith.addf %3, %5 : vector<1x512xf32>
    %c0_4 = arith.constant 0 : index
    %c0_5 = arith.constant 0 : index
    %7 = vector.load %arg9[%c0_4, %c0_5] : memref<16x512xf32, #tpu.memory_space<vmem>>, vector<1x512xf32>
    tpu.vector_store %arg9[%c0_4, %c0_5], %6 {strides = array<i32>} : memref<16x512xf32, #tpu.memory_space<vmem>>, vector<1x512xf32>,
    %c1 = arith.constant 1 : index
    %c0_6 = arith.constant 0 : index
    %8 = memref.load %arg0[%c1, %c0_6] : memref<2x8xi32, #tpu.memory_space<smem>>
    %c1_7 = arith.constant 1 : index
    %c7_8 = arith.constant 7 : index
    %9 = memref.load %arg0[%c1_7, %c7_8] : memref<2x8xi32, #tpu.memory_space<smem>>
    %10 = arith.index_cast %8 : i32 to index
    %c0_9 = arith.constant 0 : index
    %11 = vector.load %arg1[%10, %c0_9] : memref<100x512xf32, #tpu.memory_space<vmem>>, vector<1x512xf32>
    %12 = arith.index_cast %9 : i32 to index
    %c0_10 = arith.constant 0 : index
    %13 = vector.load %arg2[%12, %c0_10] : memref<100x512xf32, #tpu.memory_space<vmem>>, vector<1x512xf32>
    %14 = arith.addf %11, %13 : vector<1x512xf32>
    %c1_11 = arith.constant 1 : index
    %c0_12 = arith.constant 0 : index
    %15 = vector.load %arg9[%c1_11, %c0_12] : memref<16x512xf32, #tpu.memory_space<vmem>>, vector<1x512xf32>
    tpu.vector_store %arg9[%c1_11, %c0_12], %14 {strides = array<i32>} : memref<16x512xf32, #tpu.memory_space<vmem>>, vector<1x512xf32>,
    %c0_13 = arith.constant 0 : index
    %c1_14 = arith.constant 1 : index
    %16 = memref.load %arg0[%c0_13, %c1_14] : memref<2x8xi32, #tpu.memory_space<smem>>
    %c0_15 = arith.constant 0 : index
    %c6 = arith.constant 6 : index
    %17 = memref.load %arg0[%c0_15, %c6] : memref<2x8xi32, #tpu.memory_space<smem>>
    %18 = arith.index_cast %16 : i32 to index
    %c0_16 = arith.constant 0 : index
    %19 = vector.load %arg1[%18, %c0_16] : memref<100x512xf32, #tpu.memory_space<vmem>>, vector<1x512xf32>
    %20 = arith.index_cast %17 : i32 to index
    %c0_17 = arith.constant 0 : index
    %21 = vector.load %arg2[%20, %c0_17] : memref<100x512xf32, #tpu.memory_space<vmem>>, vector<1x512xf32>
    %22 = arith.addf %19, %21 : vector<1x512xf32>
    %c2 = arith.constant 2 : index
    %c0_18 = arith.constant 0 : index
    %23 = vector.load %arg9[%c2, %c0_18] : memref<16x512xf32, #tpu.memory_space<vmem>>, vector<1x512xf32>
    tpu.vector_store %arg9[%c2, %c0_18], %22 {strides = array<i32>} : memref<16x512xf32, #tpu.memory_space<vmem>>, vector<1x512xf32>,
    %c1_19 = arith.constant 1 : index
    %c1_20 = arith.constant 1 : index
    %24 = memref.load %arg0[%c1_19, %c1_20] : memref<2x8xi32, #tpu.memory_space<smem>>
    %c1_21 = arith.constant 1 : index
    %c6_22 = arith.constant 6 : index
    %25 = memref.load %arg0[%c1_21, %c6_22] : memref<2x8xi32, #tpu.memory_space<smem>>
    %26 = arith.index_cast %24 : i32 to index
    %c0_23 = arith.constant 0 : index
    %27 = vector.load %arg1[%26, %c0_23] : memref<100x512xf32, #tpu.memory_space<vmem>>, vector<1x512xf32>
    %28 = arith.index_cast %25 : i32 to index
    %c0_24 = arith.constant 0 : index
    %29 = vector.load %arg2[%28, %c0_24] : memref<100x512xf32, #tpu.memory_space<vmem>>, vector<1x512xf32>
    %30 = arith.addf %27, %29 : vector<1x512xf32>
    %c3 = arith.constant 3 : index
    %c0_25 = arith.constant 0 : index
    %31 = vector.load %arg9[%c3, %c0_25] : memref<16x512xf32, #tpu.memory_space<vmem>>, vector<1x512xf32>
    tpu.vector_store %arg9[%c3, %c0_25], %30 {strides = array<i32>} : memref<16x512xf32, #tpu.memory_space<vmem>>, vector<1x512xf32>,
    %c0_26 = arith.constant 0 : index
    %c2_27 = arith.constant 2 : index
    %32 = memref.load %arg0[%c0_26, %c2_27] : memref<2x8xi32, #tpu.memory_space<smem>>
    %c0_28 = arith.constant 0 : index
    %c5 = arith.constant 5 : index
    %33 = memref.load %arg0[%c0_28, %c5] : memref<2x8xi32, #tpu.memory_space<smem>>
    %34 = arith.index_cast %32 : i32 to index
    %c0_29 = arith.constant 0 : index
    %35 = vector.load %arg1[%34, %c0_29] : memref<100x512xf32, #tpu.memory_space<vmem>>, vector<1x512xf32>
    %36 = arith.index_cast %33 : i32 to index
    %c0_30 = arith.constant 0 : index
    %37 = vector.load %arg2[%36, %c0_30] : memref<100x512xf32, #tpu.memory_space<vmem>>, vector<1x512xf32>
    %38 = arith.addf %35, %37 : vector<1x512xf32>
    %c4 = arith.constant 4 : index
    %c0_31 = arith.constant 0 : index
    %39 = vector.load %arg9[%c4, %c0_31] : memref<16x512xf32, #tpu.memory_space<vmem>>, vector<1x512xf32>
    tpu.vector_store %arg9[%c4, %c0_31], %38 {strides = array<i32>} : memref<16x512xf32, #tpu.memory_space<vmem>>, vector<1x512xf32>,
    %c1_32 = arith.constant 1 : index
    %c2_33 = arith.constant 2 : index
    %40 = memref.load %arg0[%c1_32, %c2_33] : memref<2x8xi32, #tpu.memory_space<smem>>
    %c1_34 = arith.constant 1 : index
    %c5_35 = arith.constant 5 : index
    %41 = memref.load %arg0[%c1_34, %c5_35] : memref<2x8xi32, #tpu.memory_space<smem>>
    %42 = arith.index_cast %40 : i32 to index
    %c0_36 = arith.constant 0 : index
    %43 = vector.load %arg1[%42, %c0_36] : memref<100x512xf32, #tpu.memory_space<vmem>>, vector<1x512xf32>
    %44 = arith.index_cast %41 : i32 to index
    %c0_37 = arith.constant 0 : index
    %45 = vector.load %arg2[%44, %c0_37] : memref<100x512xf32, #tpu.memory_space<vmem>>, vector<1x512xf32>
    %46 = arith.addf %43, %45 : vector<1x512xf32>
    %c5_38 = arith.constant 5 : index
    %c0_39 = arith.constant 0 : index
    %47 = vector.load %arg9[%c5_38, %c0_39] : memref<16x512xf32, #tpu.memory_space<vmem>>, vector<1x512xf32>
    tpu.vector_store %arg9[%c5_38, %c0_39], %46 {strides = array<i32>} : memref<16x512xf32, #tpu.memory_space<vmem>>, vector<1x512xf32>,
    %c0_40 = arith.constant 0 : index
    %c3_41 = arith.constant 3 : index
    %48 = memref.load %arg0[%c0_40, %c3_41] : memref<2x8xi32, #tpu.memory_space<smem>>
    %c0_42 = arith.constant 0 : index
    %c4_43 = arith.constant 4 : index
    %49 = memref.load %arg0[%c0_42, %c4_43] : memref<2x8xi32, #tpu.memory_space<smem>>
    %50 = arith.index_cast %48 : i32 to index
    %c0_44 = arith.constant 0 : index
    %51 = vector.load %arg1[%50, %c0_44] : memref<100x512xf32, #tpu.memory_space<vmem>>, vector<1x512xf32>
    %52 = arith.index_cast %49 : i32 to index
    %c0_45 = arith.constant 0 : index
    %53 = vector.load %arg2[%52, %c0_45] : memref<100x512xf32, #tpu.memory_space<vmem>>, vector<1x512xf32>
    %54 = arith.addf %51, %53 : vector<1x512xf32>
    %c6_46 = arith.constant 6 : index
    %c0_47 = arith.constant 0 : index
    %55 = vector.load %arg9[%c6_46, %c0_47] : memref<16x512xf32, #tpu.memory_space<vmem>>, vector<1x512xf32>
    tpu.vector_store %arg9[%c6_46, %c0_47], %54 {strides = array<i32>} : memref<16x512xf32, #tpu.memory_space<vmem>>, vector<1x512xf32>,
    %c1_48 = arith.constant 1 : index
    %c3_49 = arith.constant 3 : index
    %56 = memref.load %arg0[%c1_48, %c3_49] : memref<2x8xi32, #tpu.memory_space<smem>>
    %c1_50 = arith.constant 1 : index
    %c4_51 = arith.constant 4 : index
    %57 = memref.load %arg0[%c1_50, %c4_51] : memref<2x8xi32, #tpu.memory_space<smem>>
    %58 = arith.index_cast %56 : i32 to index
    %c0_52 = arith.constant 0 : index
    %59 = vector.load %arg1[%58, %c0_52] : memref<100x512xf32, #tpu.memory_space<vmem>>, vector<1x512xf32>
    %60 = arith.index_cast %57 : i32 to index
    %c0_53 = arith.constant 0 : index
    %61 = vector.load %arg2[%60, %c0_53] : memref<100x512xf32, #tpu.memory_space<vmem>>, vector<1x512xf32>
    %62 = arith.addf %59, %61 : vector<1x512xf32>
    %c7_54 = arith.constant 7 : index
    %c0_55 = arith.constant 0 : index
    %63 = vector.load %arg9[%c7_54, %c0_55] : memref<16x512xf32, #tpu.memory_space<vmem>>, vector<1x512xf32>
    tpu.vector_store %arg9[%c7_54, %c0_55], %62 {strides = array<i32>} : memref<16x512xf32, #tpu.memory_space<vmem>>, vector<1x512xf32>,
    %c0_56 = arith.constant 0 : index
    %c4_57 = arith.constant 4 : index
    %64 = memref.load %arg0[%c0_56, %c4_57] : memref<2x8xi32, #tpu.memory_space<smem>>
    %c0_58 = arith.constant 0 : index
    %c3_59 = arith.constant 3 : index
    %65 = memref.load %arg0[%c0_58, %c3_59] : memref<2x8xi32, #tpu.memory_space<smem>>
    %66 = arith.index_cast %64 : i32 to index
    %c0_60 = arith.constant 0 : index
    %67 = vector.load %arg1[%66, %c0_60] : memref<100x512xf32, #tpu.memory_space<vmem>>, vector<1x512xf32>
    %68 = arith.index_cast %65 : i32 to index
    %c0_61 = arith.constant 0 : index
    %69 = vector.load %arg2[%68, %c0_61] : memref<100x512xf32, #tpu.memory_space<vmem>>, vector<1x512xf32>
    %70 = arith.addf %67, %69 : vector<1x512xf32>
    %c8 = arith.constant 8 : index
    %c0_62 = arith.constant 0 : index
    %71 = vector.load %arg9[%c8, %c0_62] : memref<16x512xf32, #tpu.memory_space<vmem>>, vector<1x512xf32>
    tpu.vector_store %arg9[%c8, %c0_62], %70 {strides = array<i32>} : memref<16x512xf32, #tpu.memory_space<vmem>>, vector<1x512xf32>,
    %c1_63 = arith.constant 1 : index
    %c4_64 = arith.constant 4 : index
    %72 = memref.load %arg0[%c1_63, %c4_64] : memref<2x8xi32, #tpu.memory_space<smem>>
    %c1_65 = arith.constant 1 : index
    %c3_66 = arith.constant 3 : index
    %73 = memref.load %arg0[%c1_65, %c3_66] : memref<2x8xi32, #tpu.memory_space<smem>>
    %74 = arith.index_cast %72 : i32 to index
    %c0_67 = arith.constant 0 : index
    %75 = vector.load %arg1[%74, %c0_67] : memref<100x512xf32, #tpu.memory_space<vmem>>, vector<1x512xf32>
    %76 = arith.index_cast %73 : i32 to index
    %c0_68 = arith.constant 0 : index
    %77 = vector.load %arg2[%76, %c0_68] : memref<100x512xf32, #tpu.memory_space<vmem>>, vector<1x512xf32>
    %78 = arith.addf %75, %77 : vector<1x512xf32>
    %c9 = arith.constant 9 : index
    %c0_69 = arith.constant 0 : index
    %79 = vector.load %arg9[%c9, %c0_69] : memref<16x512xf32, #tpu.memory_space<vmem>>, vector<1x512xf32>
    tpu.vector_store %arg9[%c9, %c0_69], %78 {strides = array<i32>} : memref<16x512xf32, #tpu.memory_space<vmem>>, vector<1x512xf32>,
    %c0_70 = arith.constant 0 : index
    %c5_71 = arith.constant 5 : index
    %80 = memref.load %arg0[%c0_70, %c5_71] : memref<2x8xi32, #tpu.memory_space<smem>>
    %c0_72 = arith.constant 0 : index
    %c2_73 = arith.constant 2 : index
    %81 = memref.load %arg0[%c0_72, %c2_73] : memref<2x8xi32, #tpu.memory_space<smem>>
    %82 = arith.index_cast %80 : i32 to index
    %c0_74 = arith.constant 0 : index
    %83 = vector.load %arg1[%82, %c0_74] : memref<100x512xf32, #tpu.memory_space<vmem>>, vector<1x512xf32>
    %84 = arith.index_cast %81 : i32 to index
    %c0_75 = arith.constant 0 : index
    %85 = vector.load %arg2[%84, %c0_75] : memref<100x512xf32, #tpu.memory_space<vmem>>, vector<1x512xf32>
    %86 = arith.addf %83, %85 : vector<1x512xf32>
    %c10 = arith.constant 10 : index
    %c0_76 = arith.constant 0 : index
    %87 = vector.load %arg9[%c10, %c0_76] : memref<16x512xf32, #tpu.memory_space<vmem>>, vector<1x512xf32>
    tpu.vector_store %arg9[%c10, %c0_76], %86 {strides = array<i32>} : memref<16x512xf32, #tpu.memory_space<vmem>>, vector<1x512xf32>,
    %c1_77 = arith.constant 1 : index
    %c5_78 = arith.constant 5 : index
    %88 = memref.load %arg0[%c1_77, %c5_78] : memref<2x8xi32, #tpu.memory_space<smem>>
    %c1_79 = arith.constant 1 : index
    %c2_80 = arith.constant 2 : index
    %89 = memref.load %arg0[%c1_79, %c2_80] : memref<2x8xi32, #tpu.memory_space<smem>>
    %90 = arith.index_cast %88 : i32 to index
    %c0_81 = arith.constant 0 : index
    %91 = vector.load %arg1[%90, %c0_81] : memref<100x512xf32, #tpu.memory_space<vmem>>, vector<1x512xf32>
    %92 = arith.index_cast %89 : i32 to index
    %c0_82 = arith.constant 0 : index
    %93 = vector.load %arg2[%92, %c0_82] : memref<100x512xf32, #tpu.memory_space<vmem>>, vector<1x512xf32>
    %94 = arith.addf %91, %93 : vector<1x512xf32>
    %c11 = arith.constant 11 : index
    %c0_83 = arith.constant 0 : index
    %95 = vector.load %arg9[%c11, %c0_83] : memref<16x512xf32, #tpu.memory_space<vmem>>, vector<1x512xf32>
    tpu.vector_store %arg9[%c11, %c0_83], %94 {strides = array<i32>} : memref<16x512xf32, #tpu.memory_space<vmem>>, vector<1x512xf32>,
    %c0_84 = arith.constant 0 : index
    %c6_85 = arith.constant 6 : index
    %96 = memref.load %arg0[%c0_84, %c6_85] : memref<2x8xi32, #tpu.memory_space<smem>>
    %c0_86 = arith.constant 0 : index
    %c1_87 = arith.constant 1 : index
    %97 = memref.load %arg0[%c0_86, %c1_87] : memref<2x8xi32, #tpu.memory_space<smem>>
    %98 = arith.index_cast %96 : i32 to index
    %c0_88 = arith.constant 0 : index
    %99 = vector.load %arg1[%98, %c0_88] : memref<100x512xf32, #tpu.memory_space<vmem>>, vector<1x512xf32>
    %100 = arith.index_cast %97 : i32 to index
    %c0_89 = arith.constant 0 : index
    %101 = vector.load %arg2[%100, %c0_89] : memref<100x512xf32, #tpu.memory_space<vmem>>, vector<1x512xf32>
    %102 = arith.addf %99, %101 : vector<1x512xf32>
    %c12 = arith.constant 12 : index
    %c0_90 = arith.constant 0 : index
    %103 = vector.load %arg9[%c12, %c0_90] : memref<16x512xf32, #tpu.memory_space<vmem>>, vector<1x512xf32>
    tpu.vector_store %arg9[%c12, %c0_90], %102 {strides = array<i32>} : memref<16x512xf32, #tpu.memory_space<vmem>>, vector<1x512xf32>,
    %c1_91 = arith.constant 1 : index
    %c6_92 = arith.constant 6 : index
    %104 = memref.load %arg0[%c1_91, %c6_92] : memref<2x8xi32, #tpu.memory_space<smem>>
    %c1_93 = arith.constant 1 : index
    %c1_94 = arith.constant 1 : index
    %105 = memref.load %arg0[%c1_93, %c1_94] : memref<2x8xi32, #tpu.memory_space<smem>>
    %106 = arith.index_cast %104 : i32 to index
    %c0_95 = arith.constant 0 : index
    %107 = vector.load %arg1[%106, %c0_95] : memref<100x512xf32, #tpu.memory_space<vmem>>, vector<1x512xf32>
    %108 = arith.index_cast %105 : i32 to index
    %c0_96 = arith.constant 0 : index
    %109 = vector.load %arg2[%108, %c0_96] : memref<100x512xf32, #tpu.memory_space<vmem>>, vector<1x512xf32>
    %110 = arith.addf %107, %109 : vector<1x512xf32>
    %c13 = arith.constant 13 : index
    %c0_97 = arith.constant 0 : index
    %111 = vector.load %arg9[%c13, %c0_97] : memref<16x512xf32, #tpu.memory_space<vmem>>, vector<1x512xf32>
    tpu.vector_store %arg9[%c13, %c0_97], %110 {strides = array<i32>} : memref<16x512xf32, #tpu.memory_space<vmem>>, vector<1x512xf32>,
    %c0_98 = arith.constant 0 : index
    %c7_99 = arith.constant 7 : index
    %112 = memref.load %arg0[%c0_98, %c7_99] : memref<2x8xi32, #tpu.memory_space<smem>>
    %c0_100 = arith.constant 0 : index
    %c0_101 = arith.constant 0 : index
    %113 = memref.load %arg0[%c0_100, %c0_101] : memref<2x8xi32, #tpu.memory_space<smem>>
    %114 = arith.index_cast %112 : i32 to index
    %c0_102 = arith.constant 0 : index
    %115 = vector.load %arg1[%114, %c0_102] : memref<100x512xf32, #tpu.memory_space<vmem>>, vector<1x512xf32>
    %116 = arith.index_cast %113 : i32 to index
    %c0_103 = arith.constant 0 : index
    %117 = vector.load %arg2[%116, %c0_103] : memref<100x512xf32, #tpu.memory_space<vmem>>, vector<1x512xf32>
    %118 = arith.addf %115, %117 : vector<1x512xf32>
    %c14 = arith.constant 14 : index
    %c0_104 = arith.constant 0 : index
    %119 = vector.load %arg9[%c14, %c0_104] : memref<16x512xf32, #tpu.memory_space<vmem>>, vector<1x512xf32>
    tpu.vector_store %arg9[%c14, %c0_104], %118 {strides = array<i32>} : memref<16x512xf32, #tpu.memory_space<vmem>>, vector<1x512xf32>,
    %c1_105 = arith.constant 1 : index
    %c7_106 = arith.constant 7 : index
    %120 = memref.load %arg0[%c1_105, %c7_106] : memref<2x8xi32, #tpu.memory_space<smem>>
    %c1_107 = arith.constant 1 : index
    %c0_108 = arith.constant 0 : index
    %121 = memref.load %arg0[%c1_107, %c0_108] : memref<2x8xi32, #tpu.memory_space<smem>>
    %122 = arith.index_cast %120 : i32 to index
    %c0_109 = arith.constant 0 : index
    %123 = vector.load %arg1[%122, %c0_109] : memref<100x512xf32, #tpu.memory_space<vmem>>, vector<1x512xf32>
    %124 = arith.index_cast %121 : i32 to index
    %c0_110 = arith.constant 0 : index
    %125 = vector.load %arg2[%124, %c0_110] : memref<100x512xf32, #tpu.memory_space<vmem>>, vector<1x512xf32>
    %126 = arith.addf %123, %125 : vector<1x512xf32>
    %c15 = arith.constant 15 : index
    %c0_111 = arith.constant 0 : index
    %127 = vector.load %arg9[%c15, %c0_111] : memref<16x512xf32, #tpu.memory_space<vmem>>, vector<1x512xf32>
    tpu.vector_store %arg9[%c15, %c0_111], %126 {strides = array<i32>} : memref<16x512xf32, #tpu.memory_space<vmem>>, vector<1x512xf32>,
    %cst = arith.constant 0.000000e+00 : f32
    %128 = vector.broadcast %cst : f32 to vector<2x128xf32>
    %cst_112 = arith.constant 0.000000e+00 : f32
    %129 = vector.broadcast %cst_112 : f32 to vector<2x128xf32>
    %cst_113 = arith.constant 0.000000e+00 : f32
    %130 = vector.broadcast %cst_113 : f32 to vector<2x128xf32>
    %131 = arith.truncf %128 : vector<2x128xf32> to vector<2x128xbf16>
    %c0_114 = arith.constant 0 : index
    %c0_115 = arith.constant 0 : index
    %132 = vector.load %arg3[%c0_114, %c0_115] : memref<128x512xbf16, #tpu.memory_space<vmem>>, vector<128x512xbf16>
    %cst_116 = arith.constant dense<0.000000e+00> : vector<2x512xf32>
    %133 = tpu.matmul %131, %132, %cst_116 {dimension_numbers = #tpu.dot_dimension_numbers<[1], [0], [0], [1], [0, 0, 1, 1], [], []>} : vector<2x128xbf16>, vector<128x512xbf16>, vector<2x512xf32> -> vector<2x512xf32>
    %c0_117 = arith.constant 0 : index
    %c0_118 = arith.constant 0 : index
    %134 = vector.load %arg9[%c0_117, %c0_118] : memref<16x512xf32, #tpu.memory_space<vmem>>, vector<2x512xf32>
    %135 = arith.addf %133, %134 : vector<2x512xf32>
    %136 = vector.extract_strided_slice %135 {offsets = [0, 0], sizes = [2, 384], strides = [1, 1]} : vector<2x512xf32> to vector<2x384xf32>
    %137 = arith.negf %136 : vector<2x384xf32>
    %138 = math.exp %137 : vector<2x384xf32>
    %cst_119 = arith.constant 1.000000e+00 : f32
    %139 = vector.broadcast %cst_119 : f32 to vector<2x384xf32>
    %140 = arith.addf %139, %138 : vector<2x384xf32>
    %141 = arith.divf %139, %140 : vector<2x384xf32>
    %142 = vector.extract_strided_slice %141 {offsets = [0, 0], sizes = [2, 128], strides = [1, 1]} : vector<2x384xf32> to vector<2x128xf32>
    %143 = vector.extract_strided_slice %141 {offsets = [0, 128], sizes = [2, 128], strides = [1, 1]} : vector<2x384xf32> to vector<2x128xf32>
    %144 = vector.extract_strided_slice %141 {offsets = [0, 256], sizes = [2, 128], strides = [1, 1]} : vector<2x384xf32> to vector<2x128xf32>
    %145 = vector.extract_strided_slice %135 {offsets = [0, 384], sizes = [2, 128], strides = [1, 1]} : vector<2x512xf32> to vector<2x128xf32>
    %146 = math.tanh %145 : vector<2x128xf32>
    %147 = arith.mulf %143, %129 : vector<2x128xf32>
    %148 = arith.mulf %142, %146 : vector<2x128xf32>
    %149 = arith.addf %147, %148 : vector<2x128xf32>
    %150 = math.tanh %149 : vector<2x128xf32>
    %151 = arith.mulf %144, %150 : vector<2x128xf32>
    %152 = arith.addf %130, %151 : vector<2x128xf32>
    %153 = arith.truncf %151 : vector<2x128xf32> to vector<2x128xbf16>
    %c0_120 = arith.constant 0 : index
    %c0_121 = arith.constant 0 : index
    %154 = vector.load %arg3[%c0_120, %c0_121] : memref<128x512xbf16, #tpu.memory_space<vmem>>, vector<128x512xbf16>
    %cst_122 = arith.constant dense<0.000000e+00> : vector<2x512xf32>
    %155 = tpu.matmul %153, %154, %cst_122 {dimension_numbers = #tpu.dot_dimension_numbers<[1], [0], [0], [1], [0, 0, 1, 1], [], []>} : vector<2x128xbf16>, vector<128x512xbf16>, vector<2x512xf32> -> vector<2x512xf32>
    %c2_123 = arith.constant 2 : index
    %c0_124 = arith.constant 0 : index
    %156 = vector.load %arg9[%c2_123, %c0_124] : memref<16x512xf32, #tpu.memory_space<vmem>>, vector<2x512xf32>
    %157 = arith.addf %155, %156 : vector<2x512xf32>
    %158 = vector.extract_strided_slice %157 {offsets = [0, 0], sizes = [2, 384], strides = [1, 1]} : vector<2x512xf32> to vector<2x384xf32>
    %159 = arith.negf %158 : vector<2x384xf32>
    %160 = math.exp %159 : vector<2x384xf32>
    %cst_125 = arith.constant 1.000000e+00 : f32
    %161 = vector.broadcast %cst_125 : f32 to vector<2x384xf32>
    %162 = arith.addf %161, %160 : vector<2x384xf32>
    %163 = arith.divf %161, %162 : vector<2x384xf32>
    %164 = vector.extract_strided_slice %163 {offsets = [0, 0], sizes = [2, 128], strides = [1, 1]} : vector<2x384xf32> to vector<2x128xf32>
    %165 = vector.extract_strided_slice %163 {offsets = [0, 128], sizes = [2, 128], strides = [1, 1]} : vector<2x384xf32> to vector<2x128xf32>
    %166 = vector.extract_strided_slice %163 {offsets = [0, 256], sizes = [2, 128], strides = [1, 1]} : vector<2x384xf32> to vector<2x128xf32>
    %167 = vector.extract_strided_slice %157 {offsets = [0, 384], sizes = [2, 128], strides = [1, 1]} : vector<2x512xf32> to vector<2x128xf32>
    %168 = math.tanh %167 : vector<2x128xf32>
    %169 = arith.mulf %165, %149 : vector<2x128xf32>
    %170 = arith.mulf %164, %168 : vector<2x128xf32>
    %171 = arith.addf %169, %170 : vector<2x128xf32>
    %172 = math.tanh %171 : vector<2x128xf32>
    %173 = arith.mulf %166, %172 : vector<2x128xf32>
    %174 = arith.addf %152, %173 : vector<2x128xf32>
    %175 = arith.maximumf %151, %173 : vector<2x128xf32>
    %176 = arith.truncf %173 : vector<2x128xf32> to vector<2x128xbf16>
    %c0_126 = arith.constant 0 : index
    %c0_127 = arith.constant 0 : index
    %177 = vector.load %arg3[%c0_126, %c0_127] : memref<128x512xbf16, #tpu.memory_space<vmem>>, vector<128x512xbf16>
    %cst_128 = arith.constant dense<0.000000e+00> : vector<2x512xf32>
    %178 = tpu.matmul %176, %177, %cst_128 {dimension_numbers = #tpu.dot_dimension_numbers<[1], [0], [0], [1], [0, 0, 1, 1], [], []>} : vector<2x128xbf16>, vector<128x512xbf16>, vector<2x512xf32> -> vector<2x512xf32>
    %c4_129 = arith.constant 4 : index
    %c0_130 = arith.constant 0 : index
    %179 = vector.load %arg9[%c4_129, %c0_130] : memref<16x512xf32, #tpu.memory_space<vmem>>, vector<2x512xf32>
    %180 = arith.addf %178, %179 : vector<2x512xf32>
    %181 = vector.extract_strided_slice %180 {offsets = [0, 0], sizes = [2, 384], strides = [1, 1]} : vector<2x512xf32> to vector<2x384xf32>
    %182 = arith.negf %181 : vector<2x384xf32>
    %183 = math.exp %182 : vector<2x384xf32>
    %cst_131 = arith.constant 1.000000e+00 : f32
    %184 = vector.broadcast %cst_131 : f32 to vector<2x384xf32>
    %185 = arith.addf %184, %183 : vector<2x384xf32>
    %186 = arith.divf %184, %185 : vector<2x384xf32>
    %187 = vector.extract_strided_slice %186 {offsets = [0, 0], sizes = [2, 128], strides = [1, 1]} : vector<2x384xf32> to vector<2x128xf32>
    %188 = vector.extract_strided_slice %186 {offsets = [0, 128], sizes = [2, 128], strides = [1, 1]} : vector<2x384xf32> to vector<2x128xf32>
    %189 = vector.extract_strided_slice %186 {offsets = [0, 256], sizes = [2, 128], strides = [1, 1]} : vector<2x384xf32> to vector<2x128xf32>
    %190 = vector.extract_strided_slice %180 {offsets = [0, 384], sizes = [2, 128], strides = [1, 1]} : vector<2x512xf32> to vector<2x128xf32>
    %191 = math.tanh %190 : vector<2x128xf32>
    %192 = arith.mulf %188, %171 : vector<2x128xf32>
    %193 = arith.mulf %187, %191 : vector<2x128xf32>
    %194 = arith.addf %192, %193 : vector<2x128xf32>
    %195 = math.tanh %194 : vector<2x128xf32>
    %196 = arith.mulf %189, %195 : vector<2x128xf32>
    %197 = arith.addf %174, %196 : vector<2x128xf32>
    %198 = arith.maximumf %175, %196 : vector<2x128xf32>
    %199 = arith.truncf %196 : vector<2x128xf32> to vector<2x128xbf16>
    %c0_132 = arith.constant 0 : index
    %c0_133 = arith.constant 0 : index
    %200 = vector.load %arg3[%c0_132, %c0_133] : memref<128x512xbf16, #tpu.memory_space<vmem>>, vector<128x512xbf16>
    %cst_134 = arith.constant dense<0.000000e+00> : vector<2x512xf32>
    %201 = tpu.matmul %199, %200, %cst_134 {dimension_numbers = #tpu.dot_dimension_numbers<[1], [0], [0], [1], [0, 0, 1, 1], [], []>} : vector<2x128xbf16>, vector<128x512xbf16>, vector<2x512xf32> -> vector<2x512xf32>
    %c6_135 = arith.constant 6 : index
    %c0_136 = arith.constant 0 : index
    %202 = vector.load %arg9[%c6_135, %c0_136] : memref<16x512xf32, #tpu.memory_space<vmem>>, vector<2x512xf32>
    %203 = arith.addf %201, %202 : vector<2x512xf32>
    %204 = vector.extract_strided_slice %203 {offsets = [0, 0], sizes = [2, 384], strides = [1, 1]} : vector<2x512xf32> to vector<2x384xf32>
    %205 = arith.negf %204 : vector<2x384xf32>
    %206 = math.exp %205 : vector<2x384xf32>
    %cst_137 = arith.constant 1.000000e+00 : f32
    %207 = vector.broadcast %cst_137 : f32 to vector<2x384xf32>
    %208 = arith.addf %207, %206 : vector<2x384xf32>
    %209 = arith.divf %207, %208 : vector<2x384xf32>
    %210 = vector.extract_strided_slice %209 {offsets = [0, 0], sizes = [2, 128], strides = [1, 1]} : vector<2x384xf32> to vector<2x128xf32>
    %211 = vector.extract_strided_slice %209 {offsets = [0, 128], sizes = [2, 128], strides = [1, 1]} : vector<2x384xf32> to vector<2x128xf32>
    %212 = vector.extract_strided_slice %209 {offsets = [0, 256], sizes = [2, 128], strides = [1, 1]} : vector<2x384xf32> to vector<2x128xf32>
    %213 = vector.extract_strided_slice %203 {offsets = [0, 384], sizes = [2, 128], strides = [1, 1]} : vector<2x512xf32> to vector<2x128xf32>
    %214 = math.tanh %213 : vector<2x128xf32>
    %215 = arith.mulf %211, %194 : vector<2x128xf32>
    %216 = arith.mulf %210, %214 : vector<2x128xf32>
    %217 = arith.addf %215, %216 : vector<2x128xf32>
    %218 = math.tanh %217 : vector<2x128xf32>
    %219 = arith.mulf %212, %218 : vector<2x128xf32>
    %220 = arith.addf %197, %219 : vector<2x128xf32>
    %221 = arith.maximumf %198, %219 : vector<2x128xf32>
    %222 = arith.truncf %219 : vector<2x128xf32> to vector<2x128xbf16>
    %c0_138 = arith.constant 0 : index
    %c0_139 = arith.constant 0 : index
    %223 = vector.load %arg3[%c0_138, %c0_139] : memref<128x512xbf16, #tpu.memory_space<vmem>>, vector<128x512xbf16>
    %cst_140 = arith.constant dense<0.000000e+00> : vector<2x512xf32>
    %224 = tpu.matmul %222, %223, %cst_140 {dimension_numbers = #tpu.dot_dimension_numbers<[1], [0], [0], [1], [0, 0, 1, 1], [], []>} : vector<2x128xbf16>, vector<128x512xbf16>, vector<2x512xf32> -> vector<2x512xf32>
    %c8_141 = arith.constant 8 : index
    %c0_142 = arith.constant 0 : index
    %225 = vector.load %arg9[%c8_141, %c0_142] : memref<16x512xf32, #tpu.memory_space<vmem>>, vector<2x512xf32>
    %226 = arith.addf %224, %225 : vector<2x512xf32>
    %227 = vector.extract_strided_slice %226 {offsets = [0, 0], sizes = [2, 384], strides = [1, 1]} : vector<2x512xf32> to vector<2x384xf32>
    %228 = arith.negf %227 : vector<2x384xf32>
    %229 = math.exp %228 : vector<2x384xf32>
    %cst_143 = arith.constant 1.000000e+00 : f32
    %230 = vector.broadcast %cst_143 : f32 to vector<2x384xf32>
    %231 = arith.addf %230, %229 : vector<2x384xf32>
    %232 = arith.divf %230, %231 : vector<2x384xf32>
    %233 = vector.extract_strided_slice %232 {offsets = [0, 0], sizes = [2, 128], strides = [1, 1]} : vector<2x384xf32> to vector<2x128xf32>
    %234 = vector.extract_strided_slice %232 {offsets = [0, 128], sizes = [2, 128], strides = [1, 1]} : vector<2x384xf32> to vector<2x128xf32>
    %235 = vector.extract_strided_slice %232 {offsets = [0, 256], sizes = [2, 128], strides = [1, 1]} : vector<2x384xf32> to vector<2x128xf32>
    %236 = vector.extract_strided_slice %226 {offsets = [0, 384], sizes = [2, 128], strides = [1, 1]} : vector<2x512xf32> to vector<2x128xf32>
    %237 = math.tanh %236 : vector<2x128xf32>
    %238 = arith.mulf %234, %217 : vector<2x128xf32>
    %239 = arith.mulf %233, %237 : vector<2x128xf32>
    %240 = arith.addf %238, %239 : vector<2x128xf32>
    %241 = math.tanh %240 : vector<2x128xf32>
    %242 = arith.mulf %235, %241 : vector<2x128xf32>
    %243 = arith.addf %220, %242 : vector<2x128xf32>
    %244 = arith.maximumf %221, %242 : vector<2x128xf32>
    %245 = arith.truncf %242 : vector<2x128xf32> to vector<2x128xbf16>
    %c0_144 = arith.constant 0 : index
    %c0_145 = arith.constant 0 : index
    %246 = vector.load %arg3[%c0_144, %c0_145] : memref<128x512xbf16, #tpu.memory_space<vmem>>, vector<128x512xbf16>
    %cst_146 = arith.constant dense<0.000000e+00> : vector<2x512xf32>
    %247 = tpu.matmul %245, %246, %cst_146 {dimension_numbers = #tpu.dot_dimension_numbers<[1], [0], [0], [1], [0, 0, 1, 1], [], []>} : vector<2x128xbf16>, vector<128x512xbf16>, vector<2x512xf32> -> vector<2x512xf32>
    %c10_147 = arith.constant 10 : index
    %c0_148 = arith.constant 0 : index
    %248 = vector.load %arg9[%c10_147, %c0_148] : memref<16x512xf32, #tpu.memory_space<vmem>>, vector<2x512xf32>
    %249 = arith.addf %247, %248 : vector<2x512xf32>
    %250 = vector.extract_strided_slice %249 {offsets = [0, 0], sizes = [2, 384], strides = [1, 1]} : vector<2x512xf32> to vector<2x384xf32>
    %251 = arith.negf %250 : vector<2x384xf32>
    %252 = math.exp %251 : vector<2x384xf32>
    %cst_149 = arith.constant 1.000000e+00 : f32
    %253 = vector.broadcast %cst_149 : f32 to vector<2x384xf32>
    %254 = arith.addf %253, %252 : vector<2x384xf32>
    %255 = arith.divf %253, %254 : vector<2x384xf32>
    %256 = vector.extract_strided_slice %255 {offsets = [0, 0], sizes = [2, 128], strides = [1, 1]} : vector<2x384xf32> to vector<2x128xf32>
    %257 = vector.extract_strided_slice %255 {offsets = [0, 128], sizes = [2, 128], strides = [1, 1]} : vector<2x384xf32> to vector<2x128xf32>
    %258 = vector.extract_strided_slice %255 {offsets = [0, 256], sizes = [2, 128], strides = [1, 1]} : vector<2x384xf32> to vector<2x128xf32>
    %259 = vector.extract_strided_slice %249 {offsets = [0, 384], sizes = [2, 128], strides = [1, 1]} : vector<2x512xf32> to vector<2x128xf32>
    %260 = math.tanh %259 : vector<2x128xf32>
    %261 = arith.mulf %257, %240 : vector<2x128xf32>
    %262 = arith.mulf %256, %260 : vector<2x128xf32>
    %263 = arith.addf %261, %262 : vector<2x128xf32>
    %264 = math.tanh %263 : vector<2x128xf32>
    %265 = arith.mulf %258, %264 : vector<2x128xf32>
    %266 = arith.addf %243, %265 : vector<2x128xf32>
    %267 = arith.maximumf %244, %265 : vector<2x128xf32>
    %268 = arith.truncf %265 : vector<2x128xf32> to vector<2x128xbf16>
    %c0_150 = arith.constant 0 : index
    %c0_151 = arith.constant 0 : index
    %269 = vector.load %arg3[%c0_150, %c0_151] : memref<128x512xbf16, #tpu.memory_space<vmem>>, vector<128x512xbf16>
    %cst_152 = arith.constant dense<0.000000e+00> : vector<2x512xf32>
    %270 = tpu.matmul %268, %269, %cst_152 {dimension_numbers = #tpu.dot_dimension_numbers<[1], [0], [0], [1], [0, 0, 1, 1], [], []>} : vector<2x128xbf16>, vector<128x512xbf16>, vector<2x512xf32> -> vector<2x512xf32>
    %c12_153 = arith.constant 12 : index
    %c0_154 = arith.constant 0 : index
    %271 = vector.load %arg9[%c12_153, %c0_154] : memref<16x512xf32, #tpu.memory_space<vmem>>, vector<2x512xf32>
    %272 = arith.addf %270, %271 : vector<2x512xf32>
    %273 = vector.extract_strided_slice %272 {offsets = [0, 0], sizes = [2, 384], strides = [1, 1]} : vector<2x512xf32> to vector<2x384xf32>
    %274 = arith.negf %273 : vector<2x384xf32>
    %275 = math.exp %274 : vector<2x384xf32>
    %cst_155 = arith.constant 1.000000e+00 : f32
    %276 = vector.broadcast %cst_155 : f32 to vector<2x384xf32>
    %277 = arith.addf %276, %275 : vector<2x384xf32>
    %278 = arith.divf %276, %277 : vector<2x384xf32>
    %279 = vector.extract_strided_slice %278 {offsets = [0, 0], sizes = [2, 128], strides = [1, 1]} : vector<2x384xf32> to vector<2x128xf32>
    %280 = vector.extract_strided_slice %278 {offsets = [0, 128], sizes = [2, 128], strides = [1, 1]} : vector<2x384xf32> to vector<2x128xf32>
    %281 = vector.extract_strided_slice %278 {offsets = [0, 256], sizes = [2, 128], strides = [1, 1]} : vector<2x384xf32> to vector<2x128xf32>
    %282 = vector.extract_strided_slice %272 {offsets = [0, 384], sizes = [2, 128], strides = [1, 1]} : vector<2x512xf32> to vector<2x128xf32>
    %283 = math.tanh %282 : vector<2x128xf32>
    %284 = arith.mulf %280, %263 : vector<2x128xf32>
    %285 = arith.mulf %279, %283 : vector<2x128xf32>
    %286 = arith.addf %284, %285 : vector<2x128xf32>
    %287 = math.tanh %286 : vector<2x128xf32>
    %288 = arith.mulf %281, %287 : vector<2x128xf32>
    %289 = arith.addf %266, %288 : vector<2x128xf32>
    %290 = arith.maximumf %267, %288 : vector<2x128xf32>
    %291 = arith.truncf %288 : vector<2x128xf32> to vector<2x128xbf16>
    %c0_156 = arith.constant 0 : index
    %c0_157 = arith.constant 0 : index
    %292 = vector.load %arg3[%c0_156, %c0_157] : memref<128x512xbf16, #tpu.memory_space<vmem>>, vector<128x512xbf16>
    %cst_158 = arith.constant dense<0.000000e+00> : vector<2x512xf32>
    %293 = tpu.matmul %291, %292, %cst_158 {dimension_numbers = #tpu.dot_dimension_numbers<[1], [0], [0], [1], [0, 0, 1, 1], [], []>} : vector<2x128xbf16>, vector<128x512xbf16>, vector<2x512xf32> -> vector<2x512xf32>
    %c14_159 = arith.constant 14 : index
    %c0_160 = arith.constant 0 : index
    %294 = vector.load %arg9[%c14_159, %c0_160] : memref<16x512xf32, #tpu.memory_space<vmem>>, vector<2x512xf32>
    %295 = arith.addf %293, %294 : vector<2x512xf32>
    %296 = vector.extract_strided_slice %295 {offsets = [0, 0], sizes = [2, 384], strides = [1, 1]} : vector<2x512xf32> to vector<2x384xf32>
    %297 = arith.negf %296 : vector<2x384xf32>
    %298 = math.exp %297 : vector<2x384xf32>
    %cst_161 = arith.constant 1.000000e+00 : f32
    %299 = vector.broadcast %cst_161 : f32 to vector<2x384xf32>
    %300 = arith.addf %299, %298 : vector<2x384xf32>
    %301 = arith.divf %299, %300 : vector<2x384xf32>
    %302 = vector.extract_strided_slice %301 {offsets = [0, 0], sizes = [2, 128], strides = [1, 1]} : vector<2x384xf32> to vector<2x128xf32>
    %303 = vector.extract_strided_slice %301 {offsets = [0, 128], sizes = [2, 128], strides = [1, 1]} : vector<2x384xf32> to vector<2x128xf32>
    %304 = vector.extract_strided_slice %301 {offsets = [0, 256], sizes = [2, 128], strides = [1, 1]} : vector<2x384xf32> to vector<2x128xf32>
    %305 = vector.extract_strided_slice %295 {offsets = [0, 384], sizes = [2, 128], strides = [1, 1]} : vector<2x512xf32> to vector<2x128xf32>
    %306 = math.tanh %305 : vector<2x128xf32>
    %307 = arith.mulf %303, %286 : vector<2x128xf32>
    %308 = arith.mulf %302, %306 : vector<2x128xf32>
    %309 = arith.addf %307, %308 : vector<2x128xf32>
    %310 = math.tanh %309 : vector<2x128xf32>
    %311 = arith.mulf %304, %310 : vector<2x128xf32>
    %312 = arith.addf %289, %311 : vector<2x128xf32>
    %313 = arith.maximumf %290, %311 : vector<2x128xf32>
    %cst_162 = arith.constant 1.250000e-01 : f32
    %314 = vector.broadcast %cst_162 : f32 to vector<2x128xf32>
    %315 = arith.mulf %312, %314 : vector<2x128xf32>
    %316 = tpu.concatenate %315, %313 in 1 : vector<2x128xf32>, vector<2x128xf32> -> vector<2x256xf32>
    %317 = arith.truncf %316 : vector<2x256xf32> to vector<2x256xbf16>
    %c0_163 = arith.constant 0 : index
    %c0_164 = arith.constant 0 : index
    %318 = vector.load %arg4[%c0_163, %c0_164] : memref<256x64xbf16, #tpu.memory_space<vmem>>, vector<256x64xbf16>
    %cst_165 = arith.constant dense<0.000000e+00> : vector<2x64xf32>
    %319 = tpu.matmul %317, %318, %cst_165 {dimension_numbers = #tpu.dot_dimension_numbers<[1], [0], [0], [1], [0, 0, 1, 1], [], []>} : vector<2x256xbf16>, vector<256x64xbf16>, vector<2x64xf32> -> vector<2x64xf32>
    %c0_166 = arith.constant 0 : index
    %c0_167 = arith.constant 0 : index
    %320 = vector.load %arg5[%c0_166, %c0_167] : memref<1x64xf32, #tpu.memory_space<vmem>>, vector<1x64xf32>
    %321 = vector.broadcast %320 : vector<1x64xf32> to vector<2x64xf32>
    %322 = arith.addf %319, %321 : vector<2x64xf32>
    %cst_168 = arith.constant 0.000000e+00 : f32
    %323 = vector.broadcast %cst_168 : f32 to vector<2x64xf32>
    %324 = arith.maximumf %322, %323 : vector<2x64xf32>
    %c0_169 = arith.constant 0 : index
    %c0_170 = arith.constant 0 : index
    %325 = vector.load %arg6[%c0_169, %c0_170] : memref<64x1xf32, #tpu.memory_space<vmem>>, vector<64x1xf32>
    %cst_171 = arith.constant dense<0.000000e+00> : vector<2x1xf32>
    %326 = tpu.matmul %324, %325, %cst_171 {dimension_numbers = #tpu.dot_dimension_numbers<[1], [0], [0], [1], [0, 0, 1, 1], [], []>} : vector<2x64xf32>, vector<64x1xf32>, vector<2x1xf32> -> vector<2x1xf32>
    %c0_172 = arith.constant 0 : index
    %c0_173 = arith.constant 0 : index
    %327 = vector.load %arg7[%c0_172, %c0_173] : memref<1x1xf32, #tpu.memory_space<vmem>>, vector<1x1xf32>
    %328 = vector.broadcast %327 : vector<1x1xf32> to vector<2x1xf32>
    %329 = arith.addf %326, %328 : vector<2x1xf32>
    %330 = arith.negf %329 : vector<2x1xf32>
    %331 = math.exp %330 : vector<2x1xf32>
    %cst_174 = arith.constant 1.000000e+00 : f32
    %332 = vector.broadcast %cst_174 : f32 to vector<2x1xf32>
    %333 = arith.addf %332, %331 : vector<2x1xf32>
    %334 = arith.divf %332, %333 : vector<2x1xf32>
    %c0_175 = arith.constant 0 : index
    %c0_176 = arith.constant 0 : index
    %335 = vector.load %arg8[%c0_175, %c0_176] : memref<2x1xf32, #tpu.memory_space<vmem>>, vector<2x1xf32>
    tpu.vector_store %arg8[%c0_175, %c0_176], %334 {strides = array<i32>} : memref<2x1xf32, #tpu.memory_space<vmem>>, vector<2x1xf32>,
    return
  }
}

</mosaic_0001>

<llo_original>
// kernel: covid_bilstm_forward.1
$region0: #{covid_bilstm_forward.1}
  #allocation0 [shape = 'u32[]', space=smem, size = 0x4, offset = 0x4, fixed_abs, tag = 'smem constant byte address 0x4 - core index']
  #allocation1 [shape = 'u32[144,128]{1,0:T(1,128)}', space=vmem, size = 0x12000, scoped, tag = 'internal scratch']
  #allocation2 [shape = 'f32[16,512]{1,0:T(8,128)}', space=vmem, size = 0x8000, scoped, tag = 'scratch operand']
  #allocation3 [shape = 'f32[1,1]{1,0:T(1,128)S(1)}', space=vmem, size = 0x200, scoped, tag = 'scoped memory for covid_bilstm_forward.1']
  %s0 = inlined_call_operand.vmem [shape: s32[2,8], index: 0, kind: input, shape index: {}]
  %s1 = inlined_call_operand.hbm [shape: f32[100,512], index: 1, kind: input, shape index: {}]
  %s2 = inlined_call_operand.hbm [shape: f32[100,512], index: 2, kind: input, shape index: {}]
  %s3 = inlined_call_operand.vmem [shape: bf16[128,512], index: 3, kind: input, shape index: {}]
  %s4 = inlined_call_operand.vmem [shape: bf16[256,64], index: 4, kind: input, shape index: {}]
  %s5 = inlined_call_operand.vmem [shape: f32[1,64], index: 5, kind: input, shape index: {}]
  %s6 = inlined_call_operand.vmem [shape: f32[64,1], index: 6, kind: input, shape index: {}]
  %s7 = inlined_call_operand.<no memory space> [shape: f32[1,1], index: 7, kind: input, shape index: {}]
  %s8 = inlined_call_operand.vmem [shape: f32[2,1], index: 8, kind: output, shape index: {}]
  %s9 = sld [smem:[#allocation0]]
  $region54: #{covid_bilstm_forward.1} parent=0
    _
  %s11 = ssub.s32 1, %s9
  %s12 = scalar_select 0, %s11, %s9
  %v13 = vstv %s7
  %14 = vst [vmem:[#allocation3] sm:$0x1] %v13
  $region1: #{covid_bilstm_forward.1} parent=0
    #allocation4 [shape = 'u8[1024]{0}', space=smem, size = 0x400, scoped, tag = 'input window, operand 0, single buffered']
    #allocation5 [shape = 's32[1]{0}', space=sflag, size = 0x4, scoped, tag = 'scoped memory for covid_bilstm_forward.1']
    #allocation6 [shape = 's32[1]{0}', space=sflag, size = 0x4, scoped, tag = 'scoped memory for covid_bilstm_forward.1']
    #allocation7 [shape = 'u8[212992]{0}', space=vmem, size = 0x34000, scoped, tag = 'input window, operand 1, single buffered']
    #allocation8 [shape = 'u8[212992]{0}', space=vmem, size = 0x34000, scoped, tag = 'input window, operand 2, single buffered']
    #allocation9 [shape = 's32[1]{0}', space=sflag, size = 0x4, scoped, tag = 'scoped memory for covid_bilstm_forward.1']
    %15 = vsyncpa [#allocation6], 0
    %16 = vsyncpa [#allocation5], 0
    %17 = vsyncpa [#allocation9], 0
    // Predicated region
    $region2: #{covid_bilstm_forward.1} parent=1 // pred_check
      _
    $region3: #{covid_bilstm_forward.1} parent=1 // pred_check_branch
      %19 = sbr.rel (0) target = $region5
    $region4: #{covid_bilstm_forward.1} parent=1 // pred_region
      %s21 = ssub.s32 32, 32
      %22 = vsyncadd [#allocation6], %s21
      %s24 = sshll.u32 %s0, 4
      %s25 = int_to_ptr.vmem [resolvable:$true] %s24
      %27 = dma.vmem_to_smem %s25, 32, [#allocation4], [#allocation6]
    $region5: #{covid_bilstm_forward.1} parent=1 // pred_fallthru
      _
    // Predicated region
    $region6: #{covid_bilstm_forward.1} parent=1 // pred_check
      _
    $region7: #{covid_bilstm_forward.1} parent=1 // pred_check_branch
      %29 = sbr.rel (0) target = $region9
    $region8: #{covid_bilstm_forward.1} parent=1 // pred_region
      %s31 = ssub.s32 6656, 6656
      %32 = vsyncadd [#allocation5], %s31
      %s33 = sshll.u32 [#allocation7], 4
      %s34 = int_to_ptr.vmem [resolvable:$true] %s33
      %39 = dma.hbm_to_vmem [thread:$0]  %s1, 6656, %s34, [#allocation5], 512, 512, 32
    $region9: #{covid_bilstm_forward.1} parent=1 // pred_fallthru
      _
    // Predicated region
    $region10: #{covid_bilstm_forward.1} parent=1 // pred_check
      _
    $region11: #{covid_bilstm_forward.1} parent=1 // pred_check_branch
      %41 = sbr.rel (0) target = $region13
    $region12: #{covid_bilstm_forward.1} parent=1 // pred_region
      %s43 = ssub.s32 6656, 6656
      %44 = vsyncadd [#allocation9], %s43
      %s45 = sshll.u32 [#allocation8], 4
      %s46 = int_to_ptr.vmem [resolvable:$true] %s45
      %51 = dma.hbm_to_vmem [thread:$0]  %s2, 6656, %s46, [#allocation9], 512, 512, 32
    $region13: #{covid_bilstm_forward.1} parent=1 // pred_fallthru
      _
    // Predicated region
    $region14: #{covid_bilstm_forward.1} parent=1 // pred_check
      _
    $region15: #{covid_bilstm_forward.1} parent=1 // pred_check_branch
      %53 = sbr.rel (0) target = $region17
    $region16: #{covid_bilstm_forward.1} parent=1 // pred_region
      _
    $region17: #{covid_bilstm_forward.1} parent=1 // pred_fallthru
      _
    // Predicated region
    $region18: #{covid_bilstm_forward.1} parent=1 // pred_check
      _
    $region19: #{covid_bilstm_forward.1} parent=1 // pred_check_branch
      %55 = sbr.rel (0) target = $region21
    $region20: #{covid_bilstm_forward.1} parent=1 // pred_region
      _
    $region21: #{covid_bilstm_forward.1} parent=1 // pred_fallthru
      _
    // Predicated region
    $region22: #{covid_bilstm_forward.1} parent=1 // pred_check
      _
    $region23: #{covid_bilstm_forward.1} parent=1 // pred_check_branch
      %57 = sbr.rel (0) target = $region25
    $region24: #{covid_bilstm_forward.1} parent=1 // pred_region
      _
    $region25: #{covid_bilstm_forward.1} parent=1 // pred_fallthru
      _
    // Predicated region
    $region26: #{covid_bilstm_forward.1} parent=1 // pred_check
      _
    $region27: #{covid_bilstm_forward.1} parent=1 // pred_check_branch
      %59 = sbr.rel (0) target = $region29
    $region28: #{covid_bilstm_forward.1} parent=1 // pred_region
      _
    $region29: #{covid_bilstm_forward.1} parent=1 // pred_fallthru
      _
    // Predicated region
    $region30: #{covid_bilstm_forward.1} parent=1 // pred_check
      _
    $region31: #{covid_bilstm_forward.1} parent=1 // pred_check_branch
      %61 = sbr.rel (0) target = $region33
    $region32: #{covid_bilstm_forward.1} parent=1 // pred_region
      _
    $region33: #{covid_bilstm_forward.1} parent=1 // pred_fallthru
      _
    // Predicated region
    $region34: #{covid_bilstm_forward.1} parent=1 // pred_check
      _
    $region35: #{covid_bilstm_forward.1} parent=1 // pred_check_branch
      %63 = sbr.rel (0) target = $region37
    $region36: #{covid_bilstm_forward.1} parent=1 // pred_region
      %64 = dma.done [#allocation6], 32
    $region37: #{covid_bilstm_forward.1} parent=1 // pred_fallthru
      _
    // Predicated region
    $region38: #{covid_bilstm_forward.1} parent=1 // pred_check
      _
    $region39: #{covid_bilstm_forward.1} parent=1 // pred_check_branch
      %66 = sbr.rel (0) target = $region41
    $region40: #{covid_bilstm_forward.1} parent=1 // pred_region
      %67 = dma.done [#allocation5], 6656
    $region41: #{covid_bilstm_forward.1} parent=1 // pred_fallthru
      _
    // Predicated region
    $region42: #{covid_bilstm_forward.1} parent=1 // pred_check
      _
    $region43: #{covid_bilstm_forward.1} parent=1 // pred_check_branch
      %69 = sbr.rel (0) target = $region45
    $region44: #{covid_bilstm_forward.1} parent=1 // pred_region
      %70 = dma.done [#allocation9], 6656
    $region45: #{covid_bilstm_forward.1} parent=1 // pred_fallthru
      _
    %71 = sfence
    %s73 = sld [smem:[#allocation4]]
    %s74 = sld [smem:[#allocation4 + $0x7]]
    %s75 = sshra.s32 %s73, 3
    %s76 = sand.u32 %s73, 7
    %s77 = sshra.s32 %s73, 3
    %s78 = sand.u32 %s73, 7
    %s79 = smul.u32 %s75, 4
    %s80 = smul.u32 %s79, 8
    %s81 = sadd.s32 %s80, %s78
    %s82 = scalar_lea.vmem [#allocation7], %s81
    %v83 = vld [vmem:[%s82] ss:$8 sm:$0xf]
    %s84 = sshra.s32 %s74, 3
    %s85 = sand.u32 %s74, 7
    %s86 = sshra.s32 %s74, 3
    %s87 = sand.u32 %s74, 7
    %s88 = smul.u32 %s84, 4
    %s89 = smul.u32 %s88, 8
    %s90 = sadd.s32 %s89, %s87
    %s91 = scalar_lea.vmem [#allocation8], %s90
    %v92 = vld [vmem:[%s91] ss:$8 sm:$0xf]
    %v93 = vadd.f32 %v83, %v92
    %v94 = vlaneseq
    %vm95 = vcmp.ge.s32.totalorder %v94, 0
    %vm96 = vcmp.lt.s32.totalorder %v94, 512
    %vm97 = vmand %vm95, %vm96
    %98 = vst.msk [vmem:[#allocation2] ss:$8 sm:$0xf] %vm97, %v93
    %99 = vst.msk [vmem:[#allocation2] ss:$8 sm:$0x0] %vm97, %v93
    %s100 = sld [smem:[#allocation4 + $0x80]]
    %s101 = sld [smem:[#allocation4 + $0x87]]
    %s102 = sshra.s32 %s100, 3
    %s103 = sand.u32 %s100, 7
    %s104 = sshra.s32 %s100, 3
    %s105 = sand.u32 %s100, 7
    %s106 = smul.u32 %s102, 4
    %s107 = smul.u32 %s106, 8
    %s108 = sadd.s32 %s107, %s105
    %s109 = scalar_lea.vmem [#allocation7], %s108
    %v110 = vld [vmem:[%s109] ss:$8 sm:$0xf]
    %s111 = sshra.s32 %s101, 3
    %s112 = sand.u32 %s101, 7
    %s113 = sshra.s32 %s101, 3
    %s114 = sand.u32 %s101, 7
    %s115 = smul.u32 %s111, 4
    %s116 = smul.u32 %s115, 8
    %s117 = sadd.s32 %s116, %s114
    %s118 = scalar_lea.vmem [#allocation8], %s117
    %v119 = vld [vmem:[%s118] ss:$8 sm:$0xf]
    %v120 = vadd.f32 %v110, %v119
    %s121 = scalar_lea.vmem [#allocation2], 1
    %122 = vst.msk [vmem:[%s121] ss:$8 sm:$0xf] %vm97, %v120
    %123 = vst.msk [vmem:[%s121] ss:$8 sm:$0x0] %vm97, %v120
    %s124 = sld [smem:[#allocation4 + $0x1]]
    %s125 = sld [smem:[#allocation4 + $0x6]]
    %s126 = sshra.s32 %s124, 3
    %s127 = sand.u32 %s124, 7
    %s128 = sshra.s32 %s124, 3
    %s129 = sand.u32 %s124, 7
    %s130 = smul.u32 %s126, 4
    %s131 = smul.u32 %s130, 8
    %s132 = sadd.s32 %s131, %s129
    %s133 = scalar_lea.vmem [#allocation7], %s132
    %v134 = vld [vmem:[%s133] ss:$8 sm:$0xf]
    %s135 = sshra.s32 %s125, 3
    %s136 = sand.u32 %s125, 7
    %s137 = sshra.s32 %s125, 3
    %s138 = sand.u32 %s125, 7
    %s139 = smul.u32 %s135, 4
    %s140 = smul.u32 %s139, 8
    %s141 = sadd.s32 %s140, %s138
    %s142 = scalar_lea.vmem [#allocation8], %s141
    %v143 = vld [vmem:[%s142] ss:$8 sm:$0xf]
    %v144 = vadd.f32 %v134, %v143
    %s145 = scalar_lea.vmem [#allocation2], 2
    %146 = vst.msk [vmem:[%s145] ss:$8 sm:$0xf] %vm97, %v144
    %147 = vst.msk [vmem:[%s145] ss:$8 sm:$0x0] %vm97, %v144
    %s148 = sld [smem:[#allocation4 + $0x81]]
    %s149 = sld [smem:[#allocation4 + $0x86]]
    %s150 = sshra.s32 %s148, 3
    %s151 = sand.u32 %s148, 7
    %s152 = sshra.s32 %s148, 3
    %s153 = sand.u32 %s148, 7
    %s154 = smul.u32 %s150, 4
    %s155 = smul.u32 %s154, 8
    %s156 = sadd.s32 %s155, %s153
    %s157 = scalar_lea.vmem [#allocation7], %s156
    %v158 = vld [vmem:[%s157] ss:$8 sm:$0xf]
    %s159 = sshra.s32 %s149, 3
    %s160 = sand.u32 %s149, 7
    %s161 = sshra.s32 %s149, 3
    %s162 = sand.u32 %s149, 7
    %s163 = smul.u32 %s159, 4
    %s164 = smul.u32 %s163, 8
    %s165 = sadd.s32 %s164, %s162
    %s166 = scalar_lea.vmem [#allocation8], %s165
    %v167 = vld [vmem:[%s166] ss:$8 sm:$0xf]
    %v168 = vadd.f32 %v158, %v167
    %s169 = scalar_lea.vmem [#allocation2], 3
    %170 = vst.msk [vmem:[%s169] ss:$8 sm:$0xf] %vm97, %v168
    %171 = vst.msk [vmem:[%s169] ss:$8 sm:$0x0] %vm97, %v168
    %s172 = sld [smem:[#allocation4 + $0x2]]
    %s173 = sld [smem:[#allocation4 + $0x5]]
    %s174 = sshra.s32 %s172, 3
    %s175 = sand.u32 %s172, 7
    %s176 = sshra.s32 %s172, 3
    %s177 = sand.u32 %s172, 7
    %s178 = smul.u32 %s174, 4
    %s179 = smul.u32 %s178, 8
    %s180 = sadd.s32 %s179, %s177
    %s181 = scalar_lea.vmem [#allocation7], %s180
    %v182 = vld [vmem:[%s181] ss:$8 sm:$0xf]
    %s183 = sshra.s32 %s173, 3
    %s184 = sand.u32 %s173, 7
    %s185 = sshra.s32 %s173, 3
    %s186 = sand.u32 %s173, 7
    %s187 = smul.u32 %s183, 4
    %s188 = smul.u32 %s187, 8
    %s189 = sadd.s32 %s188, %s186
    %s190 = scalar_lea.vmem [#allocation8], %s189
    %v191 = vld [vmem:[%s190] ss:$8 sm:$0xf]
    %v192 = vadd.f32 %v182, %v191
    %s193 = scalar_lea.vmem [#allocation2], 4
    %194 = vst.msk [vmem:[%s193] ss:$8 sm:$0xf] %vm97, %v192
    %195 = vst.msk [vmem:[%s193] ss:$8 sm:$0x0] %vm97, %v192
    %s196 = sld [smem:[#allocation4 + $0x82]]
    %s197 = sld [smem:[#allocation4 + $0x85]]
    %s198 = sshra.s32 %s196, 3
    %s199 = sand.u32 %s196, 7
    %s200 = sshra.s32 %s196, 3
    %s201 = sand.u32 %s196, 7
    %s202 = smul.u32 %s198, 4
    %s203 = smul.u32 %s202, 8
    %s204 = sadd.s32 %s203, %s201
    %s205 = scalar_lea.vmem [#allocation7], %s204
    %v206 = vld [vmem:[%s205] ss:$8 sm:$0xf]
    %s207 = sshra.s32 %s197, 3
    %s208 = sand.u32 %s197, 7
    %s209 = sshra.s32 %s197, 3
    %s210 = sand.u32 %s197, 7
    %s211 = smul.u32 %s207, 4
    %s212 = smul.u32 %s211, 8
    %s213 = sadd.s32 %s212, %s210
    %s214 = scalar_lea.vmem [#allocation8], %s213
    %v215 = vld [vmem:[%s214] ss:$8 sm:$0xf]
    %v216 = vadd.f32 %v206, %v215
    %s217 = scalar_lea.vmem [#allocation2], 5
    %218 = vst.msk [vmem:[%s217] ss:$8 sm:$0xf] %vm97, %v216
    %219 = vst.msk [vmem:[%s217] ss:$8 sm:$0x0] %vm97, %v216
    %s220 = sld [smem:[#allocation4 + $0x3]]
    %s221 = sld [smem:[#allocation4 + $0x4]]
    %s222 = sshra.s32 %s220, 3
    %s223 = sand.u32 %s220, 7
    %s224 = sshra.s32 %s220, 3
    %s225 = sand.u32 %s220, 7
    %s226 = smul.u32 %s222, 4
    %s227 = smul.u32 %s226, 8
    %s228 = sadd.s32 %s227, %s225
    %s229 = scalar_lea.vmem [#allocation7], %s228
    %v230 = vld [vmem:[%s229] ss:$8 sm:$0xf]
    %s231 = sshra.s32 %s221, 3
    %s232 = sand.u32 %s221, 7
    %s233 = sshra.s32 %s221, 3
    %s234 = sand.u32 %s221, 7
    %s235 = smul.u32 %s231, 4
    %s236 = smul.u32 %s235, 8
    %s237 = sadd.s32 %s236, %s234
    %s238 = scalar_lea.vmem [#allocation8], %s237
    %v239 = vld [vmem:[%s238] ss:$8 sm:$0xf]
    %v240 = vadd.f32 %v230, %v239
    %s241 = scalar_lea.vmem [#allocation2], 6
    %242 = vst.msk [vmem:[%s241] ss:$8 sm:$0xf] %vm97, %v240
    %243 = vst.msk [vmem:[%s241] ss:$8 sm:$0x0] %vm97, %v240
    %s244 = sld [smem:[#allocation4 + $0x83]]
    %s245 = sld [smem:[#allocation4 + $0x84]]
    %s246 = sshra.s32 %s244, 3
    %s247 = sand.u32 %s244, 7
    %s248 = sshra.s32 %s244, 3
    %s249 = sand.u32 %s244, 7
    %s250 = smul.u32 %s246, 4
    %s251 = smul.u32 %s250, 8
    %s252 = sadd.s32 %s251, %s249
    %s253 = scalar_lea.vmem [#allocation7], %s252
    %v254 = vld [vmem:[%s253] ss:$8 sm:$0xf]
    %s255 = sshra.s32 %s245, 3
    %s256 = sand.u32 %s245, 7
    %s257 = sshra.s32 %s245, 3
    %s258 = sand.u32 %s245, 7
    %s259 = smul.u32 %s255, 4
    %s260 = smul.u32 %s259, 8
    %s261 = sadd.s32 %s260, %s258
    %s262 = scalar_lea.vmem [#allocation8], %s261
    %v263 = vld [vmem:[%s262] ss:$8 sm:$0xf]
    %v264 = vadd.f32 %v254, %v263
    %s265 = scalar_lea.vmem [#allocation2], 7
    %266 = vst.msk [vmem:[%s265] ss:$8 sm:$0xf] %vm97, %v264
    %267 = vst.msk [vmem:[%s265] ss:$8 sm:$0x0] %vm97, %v264
    %s268 = sld [smem:[#allocation4 + $0x4]]
    %s269 = sld [smem:[#allocation4 + $0x3]]
    %s270 = sshra.s32 %s268, 3
    %s271 = sand.u32 %s268, 7
    %s272 = sshra.s32 %s268, 3
    %s273 = sand.u32 %s268, 7
    %s274 = smul.u32 %s270, 4
    %s275 = smul.u32 %s274, 8
    %s276 = sadd.s32 %s275, %s273
    %s277 = scalar_lea.vmem [#allocation7], %s276
    %v278 = vld [vmem:[%s277] ss:$8 sm:$0xf]
    %s279 = sshra.s32 %s269, 3
    %s280 = sand.u32 %s269, 7
    %s281 = sshra.s32 %s269, 3
    %s282 = sand.u32 %s269, 7
    %s283 = smul.u32 %s279, 4
    %s284 = smul.u32 %s283, 8
    %s285 = sadd.s32 %s284, %s282
    %s286 = scalar_lea.vmem [#allocation8], %s285
    %v287 = vld [vmem:[%s286] ss:$8 sm:$0xf]
    %v288 = vadd.f32 %v278, %v287
    %s289 = scalar_lea.vmem [#allocation2], 32
    %290 = vst.msk [vmem:[%s289] ss:$8 sm:$0xf] %vm97, %v288
    %291 = vst.msk [vmem:[%s289] ss:$8 sm:$0x0] %vm97, %v288
    %s292 = sld [smem:[#allocation4 + $0x84]]
    %s293 = sld [smem:[#allocation4 + $0x83]]
    %s294 = sshra.s32 %s292, 3
    %s295 = sand.u32 %s292, 7
    %s296 = sshra.s32 %s292, 3
    %s297 = sand.u32 %s292, 7
    %s298 = smul.u32 %s294, 4
    %s299 = smul.u32 %s298, 8
    %s300 = sadd.s32 %s299, %s297
    %s301 = scalar_lea.vmem [#allocation7], %s300
    %v302 = vld [vmem:[%s301] ss:$8 sm:$0xf]
    %s303 = sshra.s32 %s293, 3
    %s304 = sand.u32 %s293, 7
    %s305 = sshra.s32 %s293, 3
    %s306 = sand.u32 %s293, 7
    %s307 = smul.u32 %s303, 4
    %s308 = smul.u32 %s307, 8
    %s309 = sadd.s32 %s308, %s306
    %s310 = scalar_lea.vmem [#allocation8], %s309
    %v311 = vld [vmem:[%s310] ss:$8 sm:$0xf]
    %v312 = vadd.f32 %v302, %v311
    %s313 = scalar_lea.vmem [#allocation2], 33
    %314 = vst.msk [vmem:[%s313] ss:$8 sm:$0xf] %vm97, %v312
    %315 = vst.msk [vmem:[%s313] ss:$8 sm:$0x0] %vm97, %v312
    %s316 = sld [smem:[#allocation4 + $0x5]]
    %s317 = sld [smem:[#allocation4 + $0x2]]
    %s318 = sshra.s32 %s316, 3
    %s319 = sand.u32 %s316, 7
    %s320 = sshra.s32 %s316, 3
    %s321 = sand.u32 %s316, 7
    %s322 = smul.u32 %s318, 4
    %s323 = smul.u32 %s322, 8
    %s324 = sadd.s32 %s323, %s321
    %s325 = scalar_lea.vmem [#allocation7], %s324
    %v326 = vld [vmem:[%s325] ss:$8 sm:$0xf]
    %s327 = sshra.s32 %s317, 3
    %s328 = sand.u32 %s317, 7
    %s329 = sshra.s32 %s317, 3
    %s330 = sand.u32 %s317, 7
    %s331 = smul.u32 %s327, 4
    %s332 = smul.u32 %s331, 8
    %s333 = sadd.s32 %s332, %s330
    %s334 = scalar_lea.vmem [#allocation8], %s333
    %v335 = vld [vmem:[%s334] ss:$8 sm:$0xf]
    %v336 = vadd.f32 %v326, %v335
    %s337 = scalar_lea.vmem [#allocation2], 34
    %338 = vst.msk [vmem:[%s337] ss:$8 sm:$0xf] %vm97, %v336
    %339 = vst.msk [vmem:[%s337] ss:$8 sm:$0x0] %vm97, %v336
    %s340 = sld [smem:[#allocation4 + $0x85]]
    %s341 = sld [smem:[#allocation4 + $0x82]]
    %s342 = sshra.s32 %s340, 3
    %s343 = sand.u32 %s340, 7
    %s344 = sshra.s32 %s340, 3
    %s345 = sand.u32 %s340, 7
    %s346 = smul.u32 %s342, 4
    %s347 = smul.u32 %s346, 8
    %s348 = sadd.s32 %s347, %s345
    %s349 = scalar_lea.vmem [#allocation7], %s348
    %v350 = vld [vmem:[%s349] ss:$8 sm:$0xf]
    %s351 = sshra.s32 %s341, 3
    %s352 = sand.u32 %s341, 7
    %s353 = sshra.s32 %s341, 3
    %s354 = sand.u32 %s341, 7
    %s355 = smul.u32 %s351, 4
    %s356 = smul.u32 %s355, 8
    %s357 = sadd.s32 %s356, %s354
    %s358 = scalar_lea.vmem [#allocation8], %s357
    %v359 = vld [vmem:[%s358] ss:$8 sm:$0xf]
    %v360 = vadd.f32 %v350, %v359
    %s361 = scalar_lea.vmem [#allocation2], 35
    %362 = vst.msk [vmem:[%s361] ss:$8 sm:$0xf] %vm97, %v360
    %363 = vst.msk [vmem:[%s361] ss:$8 sm:$0x0] %vm97, %v360
    %s364 = sld [smem:[#allocation4 + $0x6]]
    %s365 = sld [smem:[#allocation4 + $0x1]]
    %s366 = sshra.s32 %s364, 3
    %s367 = sand.u32 %s364, 7
    %s368 = sshra.s32 %s364, 3
    %s369 = sand.u32 %s364, 7
    %s370 = smul.u32 %s366, 4
    %s371 = smul.u32 %s370, 8
    %s372 = sadd.s32 %s371, %s369
    %s373 = scalar_lea.vmem [#allocation7], %s372
    %v374 = vld [vmem:[%s373] ss:$8 sm:$0xf]
    %s375 = sshra.s32 %s365, 3
    %s376 = sand.u32 %s365, 7
    %s377 = sshra.s32 %s365, 3
    %s378 = sand.u32 %s365, 7
    %s379 = smul.u32 %s375, 4
    %s380 = smul.u32 %s379, 8
    %s381 = sadd.s32 %s380, %s378
    %s382 = scalar_lea.vmem [#allocation8], %s381
    %v383 = vld [vmem:[%s382] ss:$8 sm:$0xf]
    %v384 = vadd.f32 %v374, %v383
    %s385 = scalar_lea.vmem [#allocation2], 36
    %386 = vst.msk [vmem:[%s385] ss:$8 sm:$0xf] %vm97, %v384
    %387 = vst.msk [vmem:[%s385] ss:$8 sm:$0x0] %vm97, %v384
    %s388 = sld [smem:[#allocation4 + $0x86]]
    %s389 = sld [smem:[#allocation4 + $0x81]]
    %s390 = sshra.s32 %s388, 3
    %s391 = sand.u32 %s388, 7
    %s392 = sshra.s32 %s388, 3
    %s393 = sand.u32 %s388, 7
    %s394 = smul.u32 %s390, 4
    %s395 = smul.u32 %s394, 8
    %s396 = sadd.s32 %s395, %s393
    %s397 = scalar_lea.vmem [#allocation7], %s396
    %v398 = vld [vmem:[%s397] ss:$8 sm:$0xf]
    %s399 = sshra.s32 %s389, 3
    %s400 = sand.u32 %s389, 7
    %s401 = sshra.s32 %s389, 3
    %s402 = sand.u32 %s389, 7
    %s403 = smul.u32 %s399, 4
    %s404 = smul.u32 %s403, 8
    %s405 = sadd.s32 %s404, %s402
    %s406 = scalar_lea.vmem [#allocation8], %s405
    %v407 = vld [vmem:[%s406] ss:$8 sm:$0xf]
    %v408 = vadd.f32 %v398, %v407
    %s409 = scalar_lea.vmem [#allocation2], 37
    %410 = vst.msk [vmem:[%s409] ss:$8 sm:$0xf] %vm97, %v408
    %411 = vst.msk [vmem:[%s409] ss:$8 sm:$0x0] %vm97, %v408
    %s412 = sld [smem:[#allocation4 + $0x7]]
    %s413 = sld [smem:[#allocation4]]
    %s414 = sshra.s32 %s412, 3
    %s415 = sand.u32 %s412, 7
    %s416 = sshra.s32 %s412, 3
    %s417 = sand.u32 %s412, 7
    %s418 = smul.u32 %s414, 4
    %s419 = smul.u32 %s418, 8
    %s420 = sadd.s32 %s419, %s417
    %s421 = scalar_lea.vmem [#allocation7], %s420
    %v422 = vld [vmem:[%s421] ss:$8 sm:$0xf]
    %s423 = sshra.s32 %s413, 3
    %s424 = sand.u32 %s413, 7
    %s425 = sshra.s32 %s413, 3
    %s426 = sand.u32 %s413, 7
    %s427 = smul.u32 %s423, 4
    %s428 = smul.u32 %s427, 8
    %s429 = sadd.s32 %s428, %s426
    %s430 = scalar_lea.vmem [#allocation8], %s429
    %v431 = vld [vmem:[%s430] ss:$8 sm:$0xf]
    %v432 = vadd.f32 %v422, %v431
    %s433 = scalar_lea.vmem [#allocation2], 38
    %434 = vst.msk [vmem:[%s433] ss:$8 sm:$0xf] %vm97, %v432
    %435 = vst.msk [vmem:[%s433] ss:$8 sm:$0x0] %vm97, %v432
    %s436 = sld [smem:[#allocation4 + $0x87]]
    %s437 = sld [smem:[#allocation4 + $0x80]]
    %s438 = sshra.s32 %s436, 3
    %s439 = sand.u32 %s436, 7
    %s440 = sshra.s32 %s436, 3
    %s441 = sand.u32 %s436, 7
    %s442 = smul.u32 %s438, 4
    %s443 = smul.u32 %s442, 8
    %s444 = sadd.s32 %s443, %s441
    %s445 = scalar_lea.vmem [#allocation7], %s444
    %v446 = vld [vmem:[%s445] ss:$8 sm:$0xf]
    %s447 = sshra.s32 %s437, 3
    %s448 = sand.u32 %s437, 7
    %s449 = sshra.s32 %s437, 3
    %s450 = sand.u32 %s437, 7
    %s451 = smul.u32 %s447, 4
    %s452 = smul.u32 %s451, 8
    %s453 = sadd.s32 %s452, %s450
    %s454 = scalar_lea.vmem [#allocation8], %s453
    %v455 = vld [vmem:[%s454] ss:$8 sm:$0xf]
    %v456 = vadd.f32 %v446, %v455
    %s457 = scalar_lea.vmem [#allocation2], 39
    %458 = vst.msk [vmem:[%s457] ss:$8 sm:$0xf] %vm97, %v456
    %459 = vst.msk [vmem:[%s457] ss:$8 sm:$0x0] %vm97, %v456
    %v460 = vld [vmem:[%s3] sm:$0xff]
    %v461 = vld [vmem:[%s3 + $0x8] sm:$0xff]
    %v462 = vld [vmem:[%s3 + $0x10] sm:$0xff]
    %v463 = vld [vmem:[%s3 + $0x18] sm:$0xff]
    %v464 = vld [vmem:[%s3 + $0x20] sm:$0xff]
    %v465 = vld [vmem:[%s3 + $0x28] sm:$0xff]
    %v466 = vld [vmem:[%s3 + $0x30] sm:$0xff]
    %v467 = vld [vmem:[%s3 + $0x38] sm:$0xff]
    %v468 = vld [vmem:[%s3 + $0x40] sm:$0xff]
    %v469 = vld [vmem:[%s3 + $0x48] sm:$0xff]
    %v470 = vld [vmem:[%s3 + $0x50] sm:$0xff]
    %v471 = vld [vmem:[%s3 + $0x58] sm:$0xff]
    %v472 = vld [vmem:[%s3 + $0x60] sm:$0xff]
    %v473 = vld [vmem:[%s3 + $0x68] sm:$0xff]
    %v474 = vld [vmem:[%s3 + $0x70] sm:$0xff]
    %v475 = vld [vmem:[%s3 + $0x78] sm:$0xff]
    %v476 = vld [vmem:[%s3 + $0x80] sm:$0xff]
    %v477 = vld [vmem:[%s3 + $0x88] sm:$0xff]
    %v478 = vld [vmem:[%s3 + $0x90] sm:$0xff]
    %v479 = vld [vmem:[%s3 + $0x98] sm:$0xff]
    %v480 = vld [vmem:[%s3 + $0xa0] sm:$0xff]
    %v481 = vld [vmem:[%s3 + $0xa8] sm:$0xff]
    %v482 = vld [vmem:[%s3 + $0xb0] sm:$0xff]
    %v483 = vld [vmem:[%s3 + $0xb8] sm:$0xff]
    %v484 = vld [vmem:[%s3 + $0xc0] sm:$0xff]
    %v485 = vld [vmem:[%s3 + $0xc8] sm:$0xff]
    %v486 = vld [vmem:[%s3 + $0xd0] sm:$0xff]
    %v487 = vld [vmem:[%s3 + $0xd8] sm:$0xff]
    %v488 = vld [vmem:[%s3 + $0xe0] sm:$0xff]
    %v489 = vld [vmem:[%s3 + $0xe8] sm:$0xff]
    %v490 = vld [vmem:[%s3 + $0xf0] sm:$0xff]
    %v491 = vld [vmem:[%s3 + $0xf8] sm:$0xff]
    %v492 = vld [vmem:[#allocation2] sm:$0x3]
    %v493 = vld [vmem:[#allocation2 + $0x8] sm:$0x3]
    %v494 = vld [vmem:[#allocation2 + $0x10] sm:$0x3]
    %v495 = vld [vmem:[#allocation2 + $0x18] sm:$0x3]
    %v528 = vunpack.c.l.b16 %v460
    %v529 = vunpack.c.h.b16 %v460
    %v530 = vunpack.c.l.b16 %v461
    %v531 = vunpack.c.h.b16 %v461
    %v532 = vunpack.c.l.b16 %v462
    %v533 = vunpack.c.h.b16 %v462
    %v534 = vunpack.c.l.b16 %v463
    %v535 = vunpack.c.h.b16 %v463
    %v536 = vunpack.c.l.b16 %v464
    %v537 = vunpack.c.h.b16 %v464
    %v538 = vunpack.c.l.b16 %v465
    %v539 = vunpack.c.h.b16 %v465
    %v540 = vunpack.c.l.b16 %v466
    %v541 = vunpack.c.h.b16 %v466
    %v542 = vunpack.c.l.b16 %v467
    %v543 = vunpack.c.h.b16 %v467
    %v544 = vunpack.c.l.b16 %v468
    %v545 = vunpack.c.h.b16 %v468
    %v546 = vunpack.c.l.b16 %v469
    %v547 = vunpack.c.h.b16 %v469
    %v548 = vunpack.c.l.b16 %v470
    %v549 = vunpack.c.h.b16 %v470
    %v550 = vunpack.c.l.b16 %v471
    %v551 = vunpack.c.h.b16 %v471
    %v552 = vunpack.c.l.b16 %v472
    %v553 = vunpack.c.h.b16 %v472
    %v554 = vunpack.c.l.b16 %v473
    %v555 = vunpack.c.h.b16 %v473
    %v556 = vunpack.c.l.b16 %v474
    %v557 = vunpack.c.h.b16 %v474
    %v558 = vunpack.c.l.b16 %v475
    %v559 = vunpack.c.h.b16 %v475
    %v560 = vunpack.c.l.b16 %v476
    %v561 = vunpack.c.h.b16 %v476
    %v562 = vunpack.c.l.b16 %v477
    %v563 = vunpack.c.h.b16 %v477
    %v564 = vunpack.c.l.b16 %v478
    %v565 = vunpack.c.h.b16 %v478
    %v566 = vunpack.c.l.b16 %v479
    %v567 = vunpack.c.h.b16 %v479
    %v568 = vunpack.c.l.b16 %v480
    %v569 = vunpack.c.h.b16 %v480
    %v570 = vunpack.c.l.b16 %v481
    %v571 = vunpack.c.h.b16 %v481
    %v572 = vunpack.c.l.b16 %v482
    %v573 = vunpack.c.h.b16 %v482
    %v574 = vunpack.c.l.b16 %v483
    %v575 = vunpack.c.h.b16 %v483
    %v576 = vunpack.c.l.b16 %v484
    %v577 = vunpack.c.h.b16 %v484
    %v578 = vunpack.c.l.b16 %v485
    %v579 = vunpack.c.h.b16 %v485
    %v580 = vunpack.c.l.b16 %v486
    %v581 = vunpack.c.h.b16 %v486
    %v582 = vunpack.c.l.b16 %v487
    %v583 = vunpack.c.h.b16 %v487
    %v584 = vunpack.c.l.b16 %v488
    %v585 = vunpack.c.h.b16 %v488
    %v586 = vunpack.c.l.b16 %v489
    %v587 = vunpack.c.h.b16 %v489
    %v588 = vunpack.c.l.b16 %v490
    %v589 = vunpack.c.h.b16 %v490
    %v590 = vunpack.c.l.b16 %v491
    %v591 = vunpack.c.h.b16 %v491
    %v592 = vpack.c.b16 %v532, %v528
    %v593 = vpack.c.b16 %v533, %v529
    %v594 = vpack.c.b16 %v534, %v530
    %v595 = vpack.c.b16 %v535, %v531
    %v596 = vpack.c.b16 %v540, %v536
    %v597 = vpack.c.b16 %v541, %v537
    %v598 = vpack.c.b16 %v542, %v538
    %v599 = vpack.c.b16 %v543, %v539
    %v600 = vpack.c.b16 %v548, %v544
    %v601 = vpack.c.b16 %v549, %v545
    %v602 = vpack.c.b16 %v550, %v546
    %v603 = vpack.c.b16 %v551, %v547
    %v604 = vpack.c.b16 %v556, %v552
    %v605 = vpack.c.b16 %v557, %v553
    %v606 = vpack.c.b16 %v558, %v554
    %v607 = vpack.c.b16 %v559, %v555
    %v608 = vpack.c.b16 %v564, %v560
    %v609 = vpack.c.b16 %v565, %v561
    %v610 = vpack.c.b16 %v566, %v562
    %v611 = vpack.c.b16 %v567, %v563
    %v612 = vpack.c.b16 %v572, %v568
    %v613 = vpack.c.b16 %v573, %v569
    %v614 = vpack.c.b16 %v574, %v570
    %v615 = vpack.c.b16 %v575, %v571
    %v616 = vpack.c.b16 %v580, %v576
    %v617 = vpack.c.b16 %v581, %v577
    %v618 = vpack.c.b16 %v582, %v578
    %v619 = vpack.c.b16 %v583, %v579
    %v620 = vpack.c.b16 %v588, %v584
    %v621 = vpack.c.b16 %v589, %v585
    %v622 = vpack.c.b16 %v590, %v586
    %v623 = vpack.c.b16 %v591, %v587
    %656 = vmatprep.subr.bf16.mxu0 %v593
    %657 = vmatpush1.bf16.msra.mxu0 %v592
    %658 = vmatprep.subr.bf16.mxu0 %v597
    %659 = vmatpush1.bf16.msra.mxu0 %v596
    %660 = vmatprep.subr.bf16.mxu0 %v601
    %661 = vmatpush1.bf16.msra.mxu0 %v600
    %662 = vmatprep.subr.bf16.mxu0 %v605
    %663 = vmatpush1.bf16.msra.mxu0 %v604
    %664 = vmatprep.subr.bf16.mxu0 %v609
    %665 = vmatpush1.bf16.msra.mxu0 %v608
    %666 = vmatprep.subr.bf16.mxu0 %v613
    %667 = vmatpush1.bf16.msra.mxu0 %v612
    %668 = vmatprep.subr.bf16.mxu0 %v617
    %669 = vmatpush1.bf16.msra.mxu0 %v616
    %670 = vmatprep.subr.bf16.mxu0 %v621
    %671 = vmatpush1.bf16.msra.mxu0 %v620
    %672 = vmatprep.subr.bf16.mxu0 0
    %673 = vmatpush1.bf16.msra.mxu0 0
    %674 = vmatprep.subr.bf16.mxu0 0
    %675 = vmatpush1.bf16.msra.mxu0 0
    %676 = vmatprep.subr.bf16.mxu0 0
    %677 = vmatpush1.bf16.msra.mxu0 0
    %678 = vmatprep.subr.bf16.mxu0 0
    %679 = vmatpush1.bf16.msra.mxu0 0
    %680 = vmatprep.subr.bf16.mxu0 0
    %681 = vmatpush1.bf16.msra.mxu0 0
    %682 = vmatprep.subr.bf16.mxu0 0
    %683 = vmatpush1.bf16.msra.mxu0 0
    %684 = vmatprep.subr.bf16.mxu0 0
    %685 = vmatpush1.bf16.msra.mxu0 0
    %686 = vmatprep.subr.bf16.mxu0 0
    %687 = vmatpush1.bf16.msra.mxu0 0
    %688 = vmatprep.mubr.bf16.mxu0 0
    %689 = vmatmul.mubr.bf16.gmra.mrb[0].mxu0 0
    %v690 = vpop.f32.mrb[0].mxu0
    %v691 = vadd.f32 %v492, %v690
    %v692 = vpop.f32.mrb[0].mxu0
    %v693 = vadd.f32 %v493, %v692
    %v694 = vpop.f32.mrb[0].mxu0
    %v695 = vpop.f32.mrb[0].mxu0
    %696 = vdwg.mxu0
    %697 = vmatprep.subr.bf16.mxu0 %v595
    %698 = vmatpush1.bf16.msra.mxu0 %v594
    %699 = vmatprep.subr.bf16.mxu0 %v599
    %700 = vmatpush1.bf16.msra.mxu0 %v598
    %701 = vmatprep.subr.bf16.mxu0 %v603
    %702 = vmatpush1.bf16.msra.mxu0 %v602
    %703 = vmatprep.subr.bf16.mxu0 %v607
    %704 = vmatpush1.bf16.msra.mxu0 %v606
    %705 = vmatprep.subr.bf16.mxu0 %v611
    %706 = vmatpush1.bf16.msra.mxu0 %v610
    %707 = vmatprep.subr.bf16.mxu0 %v615
    %708 = vmatpush1.bf16.msra.mxu0 %v614
    %709 = vmatprep.subr.bf16.mxu0 %v619
    %710 = vmatpush1.bf16.msra.mxu0 %v618
    %711 = vmatprep.subr.bf16.mxu0 %v623
    %712 = vmatpush1.bf16.msra.mxu0 %v622
    %713 = vmatprep.subr.bf16.mxu0 0
    %714 = vmatpush1.bf16.msra.mxu0 0
    %715 = vmatprep.subr.bf16.mxu0 0
    %716 = vmatpush1.bf16.msra.mxu0 0
    %717 = vmatprep.subr.bf16.mxu0 0
    %718 = vmatpush1.bf16.msra.mxu0 0
    %719 = vmatprep.subr.bf16.mxu0 0
    %720 = vmatpush1.bf16.msra.mxu0 0
    %721 = vmatprep.subr.bf16.mxu0 0
    %722 = vmatpush1.bf16.msra.mxu0 0
    %723 = vmatprep.subr.bf16.mxu0 0
    %724 = vmatpush1.bf16.msra.mxu0 0
    %725 = vmatprep.subr.bf16.mxu0 0
    %726 = vmatpush1.bf16.msra.mxu0 0
    %727 = vmatprep.subr.bf16.mxu0 0
    %728 = vmatpush1.bf16.msra.mxu0 0
    %729 = vmatprep.mubr.bf16.mxu0 0
    %730 = vmatmul.mubr.bf16.gmra.mrb[0].mxu0 0
    %v731 = vpop.f32.mrb[0].mxu0
    %v732 = vadd.f32 %v494, %v731
    %v733 = vpop.f32.mrb[0].mxu0
    %v734 = vadd.f32 %v495, %v733
    %v735 = vpop.f32.mrb[0].mxu0
    %v736 = vpop.f32.mrb[0].mxu0
    %737 = vdwg.mxu0
    %v738 = vxor.u32 %v691, 2147483648
    %v739 = vxor.u32 %v693, 2147483648
    %v740 = vxor.u32 %v732, 2147483648
    %v741 = vmul.f32 %v738, 1.442695
    %v742 = vpow.pop %v741
    %v743 = vmul.f32 %v739, 1.442695
    %v744 = vpow.pop %v743
    %v745 = vmul.f32 %v740, 1.442695
    %v746 = vpow.pop %v745
    %v747 = vadd.f32 %v742, 1.0
    %v748 = vadd.f32 %v744, 1.0
    %v749 = vadd.f32 %v746, 1.0
    %v750 = vrcp.pop %v747
    %v751 = vmul.f32 1.0, %v750
    %v752 = vrcp.pop %v748
    %v753 = vmul.f32 1.0, %v752
    %v754 = vrcp.pop %v749
    %v755 = vmul.f32 1.0, %v754
    %v756 = vtanh.pop %v734
    %v757 = vmul.f32 %v753, 0.0
    %v758 = vmul.f32 %v751, %v756
    %v759 = vadd.f32 %v757, %v758
    %v760 = vtanh.pop %v759
    %v761 = vmul.f32 %v755, %v760
    %v762 = vadd.f32 %v761, 0.0
    %v763 = vpack.c.bf16 %v761, %v761
    %v764 = vld [vmem:[#allocation2] sm:$0xc]
    %v765 = vld [vmem:[#allocation2 + $0x8] sm:$0xc]
    %v766 = vld [vmem:[#allocation2 + $0x10] sm:$0xc]
    %v767 = vld [vmem:[#allocation2 + $0x18] sm:$0xc]
    %v772 = vrot.slane %v764, 2
    %v773 = vrot.slane %v765, 2
    %v774 = vrot.slane %v766, 2
    %v775 = vrot.slane %v767, 2
    %780 = vmatprep.subr.bf16.mxu0 %v593
    %781 = vmatpush1.bf16.msra.mxu0 %v592
    %782 = vmatprep.subr.bf16.mxu0 %v597
    %783 = vmatpush1.bf16.msra.mxu0 %v596
    %784 = vmatprep.subr.bf16.mxu0 %v601
    %785 = vmatpush1.bf16.msra.mxu0 %v600
    %786 = vmatprep.subr.bf16.mxu0 %v605
    %787 = vmatpush1.bf16.msra.mxu0 %v604
    %788 = vmatprep.subr.bf16.mxu0 %v609
    %789 = vmatpush1.bf16.msra.mxu0 %v608
    %790 = vmatprep.subr.bf16.mxu0 %v613
    %791 = vmatpush1.bf16.msra.mxu0 %v612
    %792 = vmatprep.subr.bf16.mxu0 %v617
    %793 = vmatpush1.bf16.msra.mxu0 %v616
    %794 = vmatprep.subr.bf16.mxu0 %v621
    %795 = vmatpush1.bf16.msra.mxu0 %v620
    %796 = vmatprep.subr.bf16.mxu0 0
    %797 = vmatpush1.bf16.msra.mxu0 0
    %798 = vmatprep.subr.bf16.mxu0 0
    %799 = vmatpush1.bf16.msra.mxu0 0
    %800 = vmatprep.subr.bf16.mxu0 0
    %801 = vmatpush1.bf16.msra.mxu0 0
    %802 = vmatprep.subr.bf16.mxu0 0
    %803 = vmatpush1.bf16.msra.mxu0 0
    %804 = vmatprep.subr.bf16.mxu0 0
    %805 = vmatpush1.bf16.msra.mxu0 0
    %806 = vmatprep.subr.bf16.mxu0 0
    %807 = vmatpush1.bf16.msra.mxu0 0
    %808 = vmatprep.subr.bf16.mxu0 0
    %809 = vmatpush1.bf16.msra.mxu0 0
    %810 = vmatprep.subr.bf16.mxu0 0
    %811 = vmatpush1.bf16.msra.mxu0 0
    %812 = vmatprep.mubr.bf16.mxu0 0
    %813 = vmatmul.mubr.bf16.gmra.mrb[0].mxu0 %v763
    %v814 = vpop.f32.mrb[0].mxu0
    %v815 = vadd.f32 %v772, %v814
    %v816 = vpop.f32.mrb[0].mxu0
    %v817 = vadd.f32 %v773, %v816
    %v818 = vpop.f32.mrb[0].mxu0
    %v819 = vpop.f32.mrb[0].mxu0
    %820 = vdwg.mxu0
    %821 = vmatprep.subr.bf16.mxu0 %v595
    %822 = vmatpush1.bf16.msra.mxu0 %v594
    %823 = vmatprep.subr.bf16.mxu0 %v599
    %824 = vmatpush1.bf16.msra.mxu0 %v598
    %825 = vmatprep.subr.bf16.mxu0 %v603
    %826 = vmatpush1.bf16.msra.mxu0 %v602
    %827 = vmatprep.subr.bf16.mxu0 %v607
    %828 = vmatpush1.bf16.msra.mxu0 %v606
    %829 = vmatprep.subr.bf16.mxu0 %v611
    %830 = vmatpush1.bf16.msra.mxu0 %v610
    %831 = vmatprep.subr.bf16.mxu0 %v615
    %832 = vmatpush1.bf16.msra.mxu0 %v614
    %833 = vmatprep.subr.bf16.mxu0 %v619
    %834 = vmatpush1.bf16.msra.mxu0 %v618
    %835 = vmatprep.subr.bf16.mxu0 %v623
    %836 = vmatpush1.bf16.msra.mxu0 %v622
    %837 = vmatprep.subr.bf16.mxu0 0
    %838 = vmatpush1.bf16.msra.mxu0 0
    %839 = vmatprep.subr.bf16.mxu0 0
    %840 = vmatpush1.bf16.msra.mxu0 0
    %841 = vmatprep.subr.bf16.mxu0 0
    %842 = vmatpush1.bf16.msra.mxu0 0
    %843 = vmatprep.subr.bf16.mxu0 0
    %844 = vmatpush1.bf16.msra.mxu0 0
    %845 = vmatprep.subr.bf16.mxu0 0
    %846 = vmatpush1.bf16.msra.mxu0 0
    %847 = vmatprep.subr.bf16.mxu0 0
    %848 = vmatpush1.bf16.msra.mxu0 0
    %849 = vmatprep.subr.bf16.mxu0 0
    %850 = vmatpush1.bf16.msra.mxu0 0
    %851 = vmatprep.subr.bf16.mxu0 0
    %852 = vmatpush1.bf16.msra.mxu0 0
    %853 = vmatprep.mubr.bf16.mxu0 0
    %854 = vmatmul.mubr.bf16.gmra.mrb[0].mxu0 %v763
    %v855 = vpop.f32.mrb[0].mxu0
    %v856 = vadd.f32 %v774, %v855
    %v857 = vpop.f32.mrb[0].mxu0
    %v858 = vadd.f32 %v775, %v857
    %v859 = vpop.f32.mrb[0].mxu0
    %v860 = vpop.f32.mrb[0].mxu0
    %861 = vdwg.mxu0
    %v862 = vxor.u32 %v815, 2147483648
    %v863 = vxor.u32 %v817, 2147483648
    %v864 = vxor.u32 %v856, 2147483648
    %v865 = vmul.f32 %v862, 1.442695
    %v866 = vpow.pop %v865
    %v867 = vmul.f32 %v863, 1.442695
    %v868 = vpow.pop %v867
    %v869 = vmul.f32 %v864, 1.442695
    %v870 = vpow.pop %v869
    %v871 = vadd.f32 %v866, 1.0
    %v872 = vadd.f32 %v868, 1.0
    %v873 = vadd.f32 %v870, 1.0
    %v874 = vrcp.pop %v871
    %v875 = vmul.f32 1.0, %v874
    %v876 = vrcp.pop %v872
    %v877 = vmul.f32 1.0, %v876
    %v878 = vrcp.pop %v873
    %v879 = vmul.f32 1.0, %v878
    %v880 = vtanh.pop %v858
    %v881 = vmul.f32 %v877, %v759
    %v882 = vmul.f32 %v875, %v880
    %v883 = vadd.f32 %v881, %v882
    %v884 = vtanh.pop %v883
    %v885 = vmul.f32 %v879, %v884
    %v886 = vadd.f32 %v762, %v885
    %v887 = vmax.f32 %v761, %v885
    %v888 = vpack.c.bf16 %v885, %v885
    %v889 = vld [vmem:[#allocation2] sm:$0x30]
    %v890 = vld [vmem:[#allocation2 + $0x8] sm:$0x30]
    %v891 = vld [vmem:[#allocation2 + $0x10] sm:$0x30]
    %v892 = vld [vmem:[#allocation2 + $0x18] sm:$0x30]
    %v897 = vrot.slane %v889, 4
    %v898 = vrot.slane %v890, 4
    %v899 = vrot.slane %v891, 4
    %v900 = vrot.slane %v892, 4
    %905 = vmatprep.subr.bf16.mxu0 %v593
    %906 = vmatpush1.bf16.msra.mxu0 %v592
    %907 = vmatprep.subr.bf16.mxu0 %v597
    %908 = vmatpush1.bf16.msra.mxu0 %v596
    %909 = vmatprep.subr.bf16.mxu0 %v601
    %910 = vmatpush1.bf16.msra.mxu0 %v600
    %911 = vmatprep.subr.bf16.mxu0 %v605
    %912 = vmatpush1.bf16.msra.mxu0 %v604
    %913 = vmatprep.subr.bf16.mxu0 %v609
    %914 = vmatpush1.bf16.msra.mxu0 %v608
    %915 = vmatprep.subr.bf16.mxu0 %v613
    %916 = vmatpush1.bf16.msra.mxu0 %v612
    %917 = vmatprep.subr.bf16.mxu0 %v617
    %918 = vmatpush1.bf16.msra.mxu0 %v616
    %919 = vmatprep.subr.bf16.mxu0 %v621
    %920 = vmatpush1.bf16.msra.mxu0 %v620
    %921 = vmatprep.subr.bf16.mxu0 0
    %922 = vmatpush1.bf16.msra.mxu0 0
    %923 = vmatprep.subr.bf16.mxu0 0
    %924 = vmatpush1.bf16.msra.mxu0 0
    %925 = vmatprep.subr.bf16.mxu0 0
    %926 = vmatpush1.bf16.msra.mxu0 0
    %927 = vmatprep.subr.bf16.mxu0 0
    %928 = vmatpush1.bf16.msra.mxu0 0
    %929 = vmatprep.subr.bf16.mxu0 0
    %930 = vmatpush1.bf16.msra.mxu0 0
    %931 = vmatprep.subr.bf16.mxu0 0
    %932 = vmatpush1.bf16.msra.mxu0 0
    %933 = vmatprep.subr.bf16.mxu0 0
    %934 = vmatpush1.bf16.msra.mxu0 0
    %935 = vmatprep.subr.bf16.mxu0 0
    %936 = vmatpush1.bf16.msra.mxu0 0
    %937 = vmatprep.mubr.bf16.mxu0 0
    %938 = vmatmul.mubr.bf16.gmra.mrb[0].mxu0 %v888
    %v939 = vpop.f32.mrb[0].mxu0
    %v940 = vadd.f32 %v897, %v939
    %v941 = vpop.f32.mrb[0].mxu0
    %v942 = vadd.f32 %v898, %v941
    %v943 = vpop.f32.mrb[0].mxu0
    %v944 = vpop.f32.mrb[0].mxu0
    %945 = vdwg.mxu0
    %946 = vmatprep.subr.bf16.mxu0 %v595
    %947 = vmatpush1.bf16.msra.mxu0 %v594
    %948 = vmatprep.subr.bf16.mxu0 %v599
    %949 = vmatpush1.bf16.msra.mxu0 %v598
    %950 = vmatprep.subr.bf16.mxu0 %v603
    %951 = vmatpush1.bf16.msra.mxu0 %v602
    %952 = vmatprep.subr.bf16.mxu0 %v607
    %953 = vmatpush1.bf16.msra.mxu0 %v606
    %954 = vmatprep.subr.bf16.mxu0 %v611
    %955 = vmatpush1.bf16.msra.mxu0 %v610
    %956 = vmatprep.subr.bf16.mxu0 %v615
    %957 = vmatpush1.bf16.msra.mxu0 %v614
    %958 = vmatprep.subr.bf16.mxu0 %v619
    %959 = vmatpush1.bf16.msra.mxu0 %v618
    %960 = vmatprep.subr.bf16.mxu0 %v623
    %961 = vmatpush1.bf16.msra.mxu0 %v622
    %962 = vmatprep.subr.bf16.mxu0 0
    %963 = vmatpush1.bf16.msra.mxu0 0
    %964 = vmatprep.subr.bf16.mxu0 0
    %965 = vmatpush1.bf16.msra.mxu0 0
    %966 = vmatprep.subr.bf16.mxu0 0
    %967 = vmatpush1.bf16.msra.mxu0 0
    %968 = vmatprep.subr.bf16.mxu0 0
    %969 = vmatpush1.bf16.msra.mxu0 0
    %970 = vmatprep.subr.bf16.mxu0 0
    %971 = vmatpush1.bf16.msra.mxu0 0
    %972 = vmatprep.subr.bf16.mxu0 0
    %973 = vmatpush1.bf16.msra.mxu0 0
    %974 = vmatprep.subr.bf16.mxu0 0
    %975 = vmatpush1.bf16.msra.mxu0 0
    %976 = vmatprep.subr.bf16.mxu0 0
    %977 = vmatpush1.bf16.msra.mxu0 0
    %978 = vmatprep.mubr.bf16.mxu0 0
    %979 = vmatmul.mubr.bf16.gmra.mrb[0].mxu0 %v888
    %v980 = vpop.f32.mrb[0].mxu0
    %v981 = vadd.f32 %v899, %v980
    %v982 = vpop.f32.mrb[0].mxu0
    %v983 = vadd.f32 %v900, %v982
    %v984 = vpop.f32.mrb[0].mxu0
    %v985 = vpop.f32.mrb[0].mxu0
    %986 = vdwg.mxu0
    %v987 = vxor.u32 %v940, 2147483648
    %v988 = vxor.u32 %v942, 2147483648
    %v989 = vxor.u32 %v981, 2147483648
    %v990 = vmul.f32 %v987, 1.442695
    %v991 = vpow.pop %v990
    %v992 = vmul.f32 %v988, 1.442695
    %v993 = vpow.pop %v992
    %v994 = vmul.f32 %v989, 1.442695
    %v995 = vpow.pop %v994
    %v996 = vadd.f32 %v991, 1.0
    %v997 = vadd.f32 %v993, 1.0
    %v998 = vadd.f32 %v995, 1.0
    %v999 = vrcp.pop %v996
    %v1000 = vmul.f32 1.0, %v999
    %v1001 = vrcp.pop %v997
    %v1002 = vmul.f32 1.0, %v1001
    %v1003 = vrcp.pop %v998
    %v1004 = vmul.f32 1.0, %v1003
    %v1005 = vtanh.pop %v983
    %v1006 = vmul.f32 %v1002, %v883
    %v1007 = vmul.f32 %v1000, %v1005
    %v1008 = vadd.f32 %v1006, %v1007
    %v1009 = vtanh.pop %v1008
    %v1010 = vmul.f32 %v1004, %v1009
    %v1011 = vadd.f32 %v886, %v1010
    %v1012 = vmax.f32 %v887, %v1010
    %v1013 = vpack.c.bf16 %v1010, %v1010
    %v1014 = vld [vmem:[#allocation2] sm:$0xc0]
    %v1015 = vld [vmem:[#allocation2 + $0x8] sm:$0xc0]
    %v1016 = vld [vmem:[#allocation2 + $0x10] sm:$0xc0]
    %v1017 = vld [vmem:[#allocation2 + $0x18] sm:$0xc0]
    %v1022 = vrot.slane %v1014, 6
    %v1023 = vrot.slane %v1015, 6
    %v1024 = vrot.slane %v1016, 6
    %v1025 = vrot.slane %v1017, 6
    %1030 = vmatprep.subr.bf16.mxu0 %v593
    %1031 = vmatpush1.bf16.msra.mxu0 %v592
    %1032 = vmatprep.subr.bf16.mxu0 %v597
    %1033 = vmatpush1.bf16.msra.mxu0 %v596
    %1034 = vmatprep.subr.bf16.mxu0 %v601
    %1035 = vmatpush1.bf16.msra.mxu0 %v600
    %1036 = vmatprep.subr.bf16.mxu0 %v605
    %1037 = vmatpush1.bf16.msra.mxu0 %v604
    %1038 = vmatprep.subr.bf16.mxu0 %v609
    %1039 = vmatpush1.bf16.msra.mxu0 %v608
    %1040 = vmatprep.subr.bf16.mxu0 %v613
    %1041 = vmatpush1.bf16.msra.mxu0 %v612
    %1042 = vmatprep.subr.bf16.mxu0 %v617
    %1043 = vmatpush1.bf16.msra.mxu0 %v616
    %1044 = vmatprep.subr.bf16.mxu0 %v621
    %1045 = vmatpush1.bf16.msra.mxu0 %v620
    %1046 = vmatprep.subr.bf16.mxu0 0
    %1047 = vmatpush1.bf16.msra.mxu0 0
    %1048 = vmatprep.subr.bf16.mxu0 0
    %1049 = vmatpush1.bf16.msra.mxu0 0
    %1050 = vmatprep.subr.bf16.mxu0 0
    %1051 = vmatpush1.bf16.msra.mxu0 0
    %1052 = vmatprep.subr.bf16.mxu0 0
    %1053 = vmatpush1.bf16.msra.mxu0 0
    %1054 = vmatprep.subr.bf16.mxu0 0
    %1055 = vmatpush1.bf16.msra.mxu0 0
    %1056 = vmatprep.subr.bf16.mxu0 0
    %1057 = vmatpush1.bf16.msra.mxu0 0
    %1058 = vmatprep.subr.bf16.mxu0 0
    %1059 = vmatpush1.bf16.msra.mxu0 0
    %1060 = vmatprep.subr.bf16.mxu0 0
    %1061 = vmatpush1.bf16.msra.mxu0 0
    %1062 = vmatprep.mubr.bf16.mxu0 0
    %1063 = vmatmul.mubr.bf16.gmra.mrb[0].mxu0 %v1013
    %v1064 = vpop.f32.mrb[0].mxu0
    %v1065 = vadd.f32 %v1022, %v1064
    %v1066 = vpop.f32.mrb[0].mxu0
    %v1067 = vadd.f32 %v1023, %v1066
    %v1068 = vpop.f32.mrb[0].mxu0
    %v1069 = vpop.f32.mrb[0].mxu0
    %1070 = vdwg.mxu0
    %1071 = vmatprep.subr.bf16.mxu0 %v595
    %1072 = vmatpush1.bf16.msra.mxu0 %v594
    %1073 = vmatprep.subr.bf16.mxu0 %v599
    %1074 = vmatpush1.bf16.msra.mxu0 %v598
    %1075 = vmatprep.subr.bf16.mxu0 %v603
    %1076 = vmatpush1.bf16.msra.mxu0 %v602
    %1077 = vmatprep.subr.bf16.mxu0 %v607
    %1078 = vmatpush1.bf16.msra.mxu0 %v606
    %1079 = vmatprep.subr.bf16.mxu0 %v611
    %1080 = vmatpush1.bf16.msra.mxu0 %v610
    %1081 = vmatprep.subr.bf16.mxu0 %v615
    %1082 = vmatpush1.bf16.msra.mxu0 %v614
    %1083 = vmatprep.subr.bf16.mxu0 %v619
    %1084 = vmatpush1.bf16.msra.mxu0 %v618
    %1085 = vmatprep.subr.bf16.mxu0 %v623
    %1086 = vmatpush1.bf16.msra.mxu0 %v622
    %1087 = vmatprep.subr.bf16.mxu0 0
    %1088 = vmatpush1.bf16.msra.mxu0 0
    %1089 = vmatprep.subr.bf16.mxu0 0
    %1090 = vmatpush1.bf16.msra.mxu0 0
    %1091 = vmatprep.subr.bf16.mxu0 0
    %1092 = vmatpush1.bf16.msra.mxu0 0
    %1093 = vmatprep.subr.bf16.mxu0 0
    %1094 = vmatpush1.bf16.msra.mxu0 0
    %1095 = vmatprep.subr.bf16.mxu0 0
    %1096 = vmatpush1.bf16.msra.mxu0 0
    %1097 = vmatprep.subr.bf16.mxu0 0
    %1098 = vmatpush1.bf16.msra.mxu0 0
    %1099 = vmatprep.subr.bf16.mxu0 0
    %1100 = vmatpush1.bf16.msra.mxu0 0
    %1101 = vmatprep.subr.bf16.mxu0 0
    %1102 = vmatpush1.bf16.msra.mxu0 0
    %1103 = vmatprep.mubr.bf16.mxu0 0
    %1104 = vmatmul.mubr.bf16.gmra.mrb[0].mxu0 %v1013
    %v1105 = vpop.f32.mrb[0].mxu0
    %v1106 = vadd.f32 %v1024, %v1105
    %v1107 = vpop.f32.mrb[0].mxu0
    %v1108 = vadd.f32 %v1025, %v1107
    %v1109 = vpop.f32.mrb[0].mxu0
    %v1110 = vpop.f32.mrb[0].mxu0
    %1111 = vdwg.mxu0
    %v1112 = vxor.u32 %v1065, 2147483648
    %v1113 = vxor.u32 %v1067, 2147483648
    %v1114 = vxor.u32 %v1106, 2147483648
    %v1115 = vmul.f32 %v1112, 1.442695
    %v1116 = vpow.pop %v1115
    %v1117 = vmul.f32 %v1113, 1.442695
    %v1118 = vpow.pop %v1117
    %v1119 = vmul.f32 %v1114, 1.442695
    %v1120 = vpow.pop %v1119
    %v1121 = vadd.f32 %v1116, 1.0
    %v1122 = vadd.f32 %v1118, 1.0
    %v1123 = vadd.f32 %v1120, 1.0
    %v1124 = vrcp.pop %v1121
    %v1125 = vmul.f32 1.0, %v1124
    %v1126 = vrcp.pop %v1122
    %v1127 = vmul.f32 1.0, %v1126
    %v1128 = vrcp.pop %v1123
    %v1129 = vmul.f32 1.0, %v1128
    %v1130 = vtanh.pop %v1108
    %v1131 = vmul.f32 %v1127, %v1008
    %v1132 = vmul.f32 %v1125, %v1130
    %v1133 = vadd.f32 %v1131, %v1132
    %v1134 = vtanh.pop %v1133
    %v1135 = vmul.f32 %v1129, %v1134
    %v1136 = vadd.f32 %v1011, %v1135
    %v1137 = vmax.f32 %v1012, %v1135
    %v1138 = vpack.c.bf16 %v1135, %v1135
    %v1139 = vld [vmem:[#allocation2 + $0x20] sm:$0x3]
    %v1140 = vld [vmem:[#allocation2 + $0x28] sm:$0x3]
    %v1141 = vld [vmem:[#allocation2 + $0x30] sm:$0x3]
    %v1142 = vld [vmem:[#allocation2 + $0x38] sm:$0x3]
    %1143 = vmatprep.subr.bf16.mxu0 %v593
    %1144 = vmatpush1.bf16.msra.mxu0 %v592
    %1145 = vmatprep.subr.bf16.mxu0 %v597
    %1146 = vmatpush1.bf16.msra.mxu0 %v596
    %1147 = vmatprep.subr.bf16.mxu0 %v601
    %1148 = vmatpush1.bf16.msra.mxu0 %v600
    %1149 = vmatprep.subr.bf16.mxu0 %v605
    %1150 = vmatpush1.bf16.msra.mxu0 %v604
    %1151 = vmatprep.subr.bf16.mxu0 %v609
    %1152 = vmatpush1.bf16.msra.mxu0 %v608
    %1153 = vmatprep.subr.bf16.mxu0 %v613
    %1154 = vmatpush1.bf16.msra.mxu0 %v612
    %1155 = vmatprep.subr.bf16.mxu0 %v617
    %1156 = vmatpush1.bf16.msra.mxu0 %v616
    %1157 = vmatprep.subr.bf16.mxu0 %v621
    %1158 = vmatpush1.bf16.msra.mxu0 %v620
    %1159 = vmatprep.subr.bf16.mxu0 0
    %1160 = vmatpush1.bf16.msra.mxu0 0
    %1161 = vmatprep.subr.bf16.mxu0 0
    %1162 = vmatpush1.bf16.msra.mxu0 0
    %1163 = vmatprep.subr.bf16.mxu0 0
    %1164 = vmatpush1.bf16.msra.mxu0 0
    %1165 = vmatprep.subr.bf16.mxu0 0
    %1166 = vmatpush1.bf16.msra.mxu0 0
    %1167 = vmatprep.subr.bf16.mxu0 0
    %1168 = vmatpush1.bf16.msra.mxu0 0
    %1169 = vmatprep.subr.bf16.mxu0 0
    %1170 = vmatpush1.bf16.msra.mxu0 0
    %1171 = vmatprep.subr.bf16.mxu0 0
    %1172 = vmatpush1.bf16.msra.mxu0 0
    %1173 = vmatprep.subr.bf16.mxu0 0
    %1174 = vmatpush1.bf16.msra.mxu0 0
    %1175 = vmatprep.mubr.bf16.mxu0 0
    %1176 = vmatmul.mubr.bf16.gmra.mrb[0].mxu0 %v1138
    %v1177 = vpop.f32.mrb[0].mxu0
    %v1178 = vadd.f32 %v1139, %v1177
    %v1179 = vpop.f32.mrb[0].mxu0
    %v1180 = vadd.f32 %v1140, %v1179
    %v1181 = vpop.f32.mrb[0].mxu0
    %v1182 = vpop.f32.mrb[0].mxu0
    %1183 = vdwg.mxu0
    %1184 = vmatprep.subr.bf16.mxu0 %v595
    %1185 = vmatpush1.bf16.msra.mxu0 %v594
    %1186 = vmatprep.subr.bf16.mxu0 %v599
    %1187 = vmatpush1.bf16.msra.mxu0 %v598
    %1188 = vmatprep.subr.bf16.mxu0 %v603
    %1189 = vmatpush1.bf16.msra.mxu0 %v602
    %1190 = vmatprep.subr.bf16.mxu0 %v607
    %1191 = vmatpush1.bf16.msra.mxu0 %v606
    %1192 = vmatprep.subr.bf16.mxu0 %v611
    %1193 = vmatpush1.bf16.msra.mxu0 %v610
    %1194 = vmatprep.subr.bf16.mxu0 %v615
    %1195 = vmatpush1.bf16.msra.mxu0 %v614
    %1196 = vmatprep.subr.bf16.mxu0 %v619
    %1197 = vmatpush1.bf16.msra.mxu0 %v618
    %1198 = vmatprep.subr.bf16.mxu0 %v623
    %1199 = vmatpush1.bf16.msra.mxu0 %v622
    %1200 = vmatprep.subr.bf16.mxu0 0
    %1201 = vmatpush1.bf16.msra.mxu0 0
    %1202 = vmatprep.subr.bf16.mxu0 0
    %1203 = vmatpush1.bf16.msra.mxu0 0
    %1204 = vmatprep.subr.bf16.mxu0 0
    %1205 = vmatpush1.bf16.msra.mxu0 0
    %1206 = vmatprep.subr.bf16.mxu0 0
    %1207 = vmatpush1.bf16.msra.mxu0 0
    %1208 = vmatprep.subr.bf16.mxu0 0
    %1209 = vmatpush1.bf16.msra.mxu0 0
    %1210 = vmatprep.subr.bf16.mxu0 0
    %1211 = vmatpush1.bf16.msra.mxu0 0
    %1212 = vmatprep.subr.bf16.mxu0 0
    %1213 = vmatpush1.bf16.msra.mxu0 0
    %1214 = vmatprep.subr.bf16.mxu0 0
    %1215 = vmatpush1.bf16.msra.mxu0 0
    %1216 = vmatprep.mubr.bf16.mxu0 0
    %1217 = vmatmul.mubr.bf16.gmra.mrb[0].mxu0 %v1138
    %v1218 = vpop.f32.mrb[0].mxu0
    %v1219 = vadd.f32 %v1141, %v1218
    %v1220 = vpop.f32.mrb[0].mxu0
    %v1221 = vadd.f32 %v1142, %v1220
    %v1222 = vpop.f32.mrb[0].mxu0
    %v1223 = vpop.f32.mrb[0].mxu0
    %1224 = vdwg.mxu0
    %v1225 = vxor.u32 %v1178, 2147483648
    %v1226 = vxor.u32 %v1180, 2147483648
    %v1227 = vxor.u32 %v1219, 2147483648
    %v1228 = vmul.f32 %v1225, 1.442695
    %v1229 = vpow.pop %v1228
    %v1230 = vmul.f32 %v1226, 1.442695
    %v1231 = vpow.pop %v1230
    %v1232 = vmul.f32 %v1227, 1.442695
    %v1233 = vpow.pop %v1232
    %v1234 = vadd.f32 %v1229, 1.0
    %v1235 = vadd.f32 %v1231, 1.0
    %v1236 = vadd.f32 %v1233, 1.0
    %v1237 = vrcp.pop %v1234
    %v1238 = vmul.f32 1.0, %v1237
    %v1239 = vrcp.pop %v1235
    %v1240 = vmul.f32 1.0, %v1239
    %v1241 = vrcp.pop %v1236
    %v1242 = vmul.f32 1.0, %v1241
    %v1243 = vtanh.pop %v1221
    %v1244 = vmul.f32 %v1240, %v1133
    %v1245 = vmul.f32 %v1238, %v1243
    %v1246 = vadd.f32 %v1244, %v1245
    %v1247 = vtanh.pop %v1246
    %v1248 = vmul.f32 %v1242, %v1247
    %v1249 = vadd.f32 %v1136, %v1248
    %v1250 = vmax.f32 %v1137, %v1248
    %v1251 = vpack.c.bf16 %v1248, %v1248
    %v1252 = vld [vmem:[#allocation2 + $0x20] sm:$0xc]
    %v1253 = vld [vmem:[#allocation2 + $0x28] sm:$0xc]
    %v1254 = vld [vmem:[#allocation2 + $0x30] sm:$0xc]
    %v1255 = vld [vmem:[#allocation2 + $0x38] sm:$0xc]
    %v1260 = vrot.slane %v1252, 2
    %v1261 = vrot.slane %v1253, 2
    %v1262 = vrot.slane %v1254, 2
    %v1263 = vrot.slane %v1255, 2
    %1268 = vmatprep.subr.bf16.mxu0 %v593
    %1269 = vmatpush1.bf16.msra.mxu0 %v592
    %1270 = vmatprep.subr.bf16.mxu0 %v597
    %1271 = vmatpush1.bf16.msra.mxu0 %v596
    %1272 = vmatprep.subr.bf16.mxu0 %v601
    %1273 = vmatpush1.bf16.msra.mxu0 %v600
    %1274 = vmatprep.subr.bf16.mxu0 %v605
    %1275 = vmatpush1.bf16.msra.mxu0 %v604
    %1276 = vmatprep.subr.bf16.mxu0 %v609
    %1277 = vmatpush1.bf16.msra.mxu0 %v608
    %1278 = vmatprep.subr.bf16.mxu0 %v613
    %1279 = vmatpush1.bf16.msra.mxu0 %v612
    %1280 = vmatprep.subr.bf16.mxu0 %v617
    %1281 = vmatpush1.bf16.msra.mxu0 %v616
    %1282 = vmatprep.subr.bf16.mxu0 %v621
    %1283 = vmatpush1.bf16.msra.mxu0 %v620
    %1284 = vmatprep.subr.bf16.mxu0 0
    %1285 = vmatpush1.bf16.msra.mxu0 0
    %1286 = vmatprep.subr.bf16.mxu0 0
    %1287 = vmatpush1.bf16.msra.mxu0 0
    %1288 = vmatprep.subr.bf16.mxu0 0
    %1289 = vmatpush1.bf16.msra.mxu0 0
    %1290 = vmatprep.subr.bf16.mxu0 0
    %1291 = vmatpush1.bf16.msra.mxu0 0
    %1292 = vmatprep.subr.bf16.mxu0 0
    %1293 = vmatpush1.bf16.msra.mxu0 0
    %1294 = vmatprep.subr.bf16.mxu0 0
    %1295 = vmatpush1.bf16.msra.mxu0 0
    %1296 = vmatprep.subr.bf16.mxu0 0
    %1297 = vmatpush1.bf16.msra.mxu0 0
    %1298 = vmatprep.subr.bf16.mxu0 0
    %1299 = vmatpush1.bf16.msra.mxu0 0
    %1300 = vmatprep.mubr.bf16.mxu0 0
    %1301 = vmatmul.mubr.bf16.gmra.mrb[0].mxu0 %v1251
    %v1302 = vpop.f32.mrb[0].mxu0
    %v1303 = vadd.f32 %v1260, %v1302
    %v1304 = vpop.f32.mrb[0].mxu0
    %v1305 = vadd.f32 %v1261, %v1304
    %v1306 = vpop.f32.mrb[0].mxu0
    %v1307 = vpop.f32.mrb[0].mxu0
    %1308 = vdwg.mxu0
    %1309 = vmatprep.subr.bf16.mxu0 %v595
    %1310 = vmatpush1.bf16.msra.mxu0 %v594
    %1311 = vmatprep.subr.bf16.mxu0 %v599
    %1312 = vmatpush1.bf16.msra.mxu0 %v598
    %1313 = vmatprep.subr.bf16.mxu0 %v603
    %1314 = vmatpush1.bf16.msra.mxu0 %v602
    %1315 = vmatprep.subr.bf16.mxu0 %v607
    %1316 = vmatpush1.bf16.msra.mxu0 %v606
    %1317 = vmatprep.subr.bf16.mxu0 %v611
    %1318 = vmatpush1.bf16.msra.mxu0 %v610
    %1319 = vmatprep.subr.bf16.mxu0 %v615
    %1320 = vmatpush1.bf16.msra.mxu0 %v614
    %1321 = vmatprep.subr.bf16.mxu0 %v619
    %1322 = vmatpush1.bf16.msra.mxu0 %v618
    %1323 = vmatprep.subr.bf16.mxu0 %v623
    %1324 = vmatpush1.bf16.msra.mxu0 %v622
    %1325 = vmatprep.subr.bf16.mxu0 0
    %1326 = vmatpush1.bf16.msra.mxu0 0
    %1327 = vmatprep.subr.bf16.mxu0 0
    %1328 = vmatpush1.bf16.msra.mxu0 0
    %1329 = vmatprep.subr.bf16.mxu0 0
    %1330 = vmatpush1.bf16.msra.mxu0 0
    %1331 = vmatprep.subr.bf16.mxu0 0
    %1332 = vmatpush1.bf16.msra.mxu0 0
    %1333 = vmatprep.subr.bf16.mxu0 0
    %1334 = vmatpush1.bf16.msra.mxu0 0
    %1335 = vmatprep.subr.bf16.mxu0 0
    %1336 = vmatpush1.bf16.msra.mxu0 0
    %1337 = vmatprep.subr.bf16.mxu0 0
    %1338 = vmatpush1.bf16.msra.mxu0 0
    %1339 = vmatprep.subr.bf16.mxu0 0
    %1340 = vmatpush1.bf16.msra.mxu0 0
    %1341 = vmatprep.mubr.bf16.mxu0 0
    %1342 = vmatmul.mubr.bf16.gmra.mrb[0].mxu0 %v1251
    %v1343 = vpop.f32.mrb[0].mxu0
    %v1344 = vadd.f32 %v1262, %v1343
    %v1345 = vpop.f32.mrb[0].mxu0
    %v1346 = vadd.f32 %v1263, %v1345
    %v1347 = vpop.f32.mrb[0].mxu0
    %v1348 = vpop.f32.mrb[0].mxu0
    %1349 = vdwg.mxu0
    %v1350 = vxor.u32 %v1303, 2147483648
    %v1351 = vxor.u32 %v1305, 2147483648
    %v1352 = vxor.u32 %v1344, 2147483648
    %v1353 = vmul.f32 %v1350, 1.442695
    %v1354 = vpow.pop %v1353
    %v1355 = vmul.f32 %v1351, 1.442695
    %v1356 = vpow.pop %v1355
    %v1357 = vmul.f32 %v1352, 1.442695
    %v1358 = vpow.pop %v1357
    %v1359 = vadd.f32 %v1354, 1.0
    %v1360 = vadd.f32 %v1356, 1.0
    %v1361 = vadd.f32 %v1358, 1.0
    %v1362 = vrcp.pop %v1359
    %v1363 = vmul.f32 1.0, %v1362
    %v1364 = vrcp.pop %v1360
    %v1365 = vmul.f32 1.0, %v1364
    %v1366 = vrcp.pop %v1361
    %v1367 = vmul.f32 1.0, %v1366
    %v1368 = vtanh.pop %v1346
    %v1369 = vmul.f32 %v1365, %v1246
    %v1370 = vmul.f32 %v1363, %v1368
    %v1371 = vadd.f32 %v1369, %v1370
    %v1372 = vtanh.pop %v1371
    %v1373 = vmul.f32 %v1367, %v1372
    %v1374 = vadd.f32 %v1249, %v1373
    %v1375 = vmax.f32 %v1250, %v1373
    %v1376 = vpack.c.bf16 %v1373, %v1373
    %v1377 = vld [vmem:[#allocation2 + $0x20] sm:$0x30]
    %v1378 = vld [vmem:[#allocation2 + $0x28] sm:$0x30]
    %v1379 = vld [vmem:[#allocation2 + $0x30] sm:$0x30]
    %v1380 = vld [vmem:[#allocation2 + $0x38] sm:$0x30]
    %v1385 = vrot.slane %v1377, 4
    %v1386 = vrot.slane %v1378, 4
    %v1387 = vrot.slane %v1379, 4
    %v1388 = vrot.slane %v1380, 4
    %1393 = vmatprep.subr.bf16.mxu0 %v593
    %1394 = vmatpush1.bf16.msra.mxu0 %v592
    %1395 = vmatprep.subr.bf16.mxu0 %v597
    %1396 = vmatpush1.bf16.msra.mxu0 %v596
    %1397 = vmatprep.subr.bf16.mxu0 %v601
    %1398 = vmatpush1.bf16.msra.mxu0 %v600
    %1399 = vmatprep.subr.bf16.mxu0 %v605
    %1400 = vmatpush1.bf16.msra.mxu0 %v604
    %1401 = vmatprep.subr.bf16.mxu0 %v609
    %1402 = vmatpush1.bf16.msra.mxu0 %v608
    %1403 = vmatprep.subr.bf16.mxu0 %v613
    %1404 = vmatpush1.bf16.msra.mxu0 %v612
    %1405 = vmatprep.subr.bf16.mxu0 %v617
    %1406 = vmatpush1.bf16.msra.mxu0 %v616
    %1407 = vmatprep.subr.bf16.mxu0 %v621
    %1408 = vmatpush1.bf16.msra.mxu0 %v620
    %1409 = vmatprep.subr.bf16.mxu0 0
    %1410 = vmatpush1.bf16.msra.mxu0 0
    %1411 = vmatprep.subr.bf16.mxu0 0
    %1412 = vmatpush1.bf16.msra.mxu0 0
    %1413 = vmatprep.subr.bf16.mxu0 0
    %1414 = vmatpush1.bf16.msra.mxu0 0
    %1415 = vmatprep.subr.bf16.mxu0 0
    %1416 = vmatpush1.bf16.msra.mxu0 0
    %1417 = vmatprep.subr.bf16.mxu0 0
    %1418 = vmatpush1.bf16.msra.mxu0 0
    %1419 = vmatprep.subr.bf16.mxu0 0
    %1420 = vmatpush1.bf16.msra.mxu0 0
    %1421 = vmatprep.subr.bf16.mxu0 0
    %1422 = vmatpush1.bf16.msra.mxu0 0
    %1423 = vmatprep.subr.bf16.mxu0 0
    %1424 = vmatpush1.bf16.msra.mxu0 0
    %1425 = vmatprep.mubr.bf16.mxu0 0
    %1426 = vmatmul.mubr.bf16.gmra.mrb[0].mxu0 %v1376
    %v1427 = vpop.f32.mrb[0].mxu0
    %v1428 = vadd.f32 %v1385, %v1427
    %v1429 = vpop.f32.mrb[0].mxu0
    %v1430 = vadd.f32 %v1386, %v1429
    %v1431 = vpop.f32.mrb[0].mxu0
    %v1432 = vpop.f32.mrb[0].mxu0
    %1433 = vdwg.mxu0
    %1434 = vmatprep.subr.bf16.mxu0 %v595
    %1435 = vmatpush1.bf16.msra.mxu0 %v594
    %1436 = vmatprep.subr.bf16.mxu0 %v599
    %1437 = vmatpush1.bf16.msra.mxu0 %v598
    %1438 = vmatprep.subr.bf16.mxu0 %v603
    %1439 = vmatpush1.bf16.msra.mxu0 %v602
    %1440 = vmatprep.subr.bf16.mxu0 %v607
    %1441 = vmatpush1.bf16.msra.mxu0 %v606
    %1442 = vmatprep.subr.bf16.mxu0 %v611
    %1443 = vmatpush1.bf16.msra.mxu0 %v610
    %1444 = vmatprep.subr.bf16.mxu0 %v615
    %1445 = vmatpush1.bf16.msra.mxu0 %v614
    %1446 = vmatprep.subr.bf16.mxu0 %v619
    %1447 = vmatpush1.bf16.msra.mxu0 %v618
    %1448 = vmatprep.subr.bf16.mxu0 %v623
    %1449 = vmatpush1.bf16.msra.mxu0 %v622
    %1450 = vmatprep.subr.bf16.mxu0 0
    %1451 = vmatpush1.bf16.msra.mxu0 0
    %1452 = vmatprep.subr.bf16.mxu0 0
    %1453 = vmatpush1.bf16.msra.mxu0 0
    %1454 = vmatprep.subr.bf16.mxu0 0
    %1455 = vmatpush1.bf16.msra.mxu0 0
    %1456 = vmatprep.subr.bf16.mxu0 0
    %1457 = vmatpush1.bf16.msra.mxu0 0
    %1458 = vmatprep.subr.bf16.mxu0 0
    %1459 = vmatpush1.bf16.msra.mxu0 0
    %1460 = vmatprep.subr.bf16.mxu0 0
    %1461 = vmatpush1.bf16.msra.mxu0 0
    %1462 = vmatprep.subr.bf16.mxu0 0
    %1463 = vmatpush1.bf16.msra.mxu0 0
    %1464 = vmatprep.subr.bf16.mxu0 0
    %1465 = vmatpush1.bf16.msra.mxu0 0
    %1466 = vmatprep.mubr.bf16.mxu0 0
    %1467 = vmatmul.mubr.bf16.gmra.mrb[0].mxu0 %v1376
    %v1468 = vpop.f32.mrb[0].mxu0
    %v1469 = vadd.f32 %v1387, %v1468
    %v1470 = vpop.f32.mrb[0].mxu0
    %v1471 = vadd.f32 %v1388, %v1470
    %v1472 = vpop.f32.mrb[0].mxu0
    %v1473 = vpop.f32.mrb[0].mxu0
    %1474 = vdwg.mxu0
    %v1475 = vxor.u32 %v1428, 2147483648
    %v1476 = vxor.u32 %v1430, 2147483648
    %v1477 = vxor.u32 %v1469, 2147483648
    %v1478 = vmul.f32 %v1475, 1.442695
    %v1479 = vpow.pop %v1478
    %v1480 = vmul.f32 %v1476, 1.442695
    %v1481 = vpow.pop %v1480
    %v1482 = vmul.f32 %v1477, 1.442695
    %v1483 = vpow.pop %v1482
    %v1484 = vadd.f32 %v1479, 1.0
    %v1485 = vadd.f32 %v1481, 1.0
    %v1486 = vadd.f32 %v1483, 1.0
    %v1487 = vrcp.pop %v1484
    %v1488 = vmul.f32 1.0, %v1487
    %v1489 = vrcp.pop %v1485
    %v1490 = vmul.f32 1.0, %v1489
    %v1491 = vrcp.pop %v1486
    %v1492 = vmul.f32 1.0, %v1491
    %v1493 = vtanh.pop %v1471
    %v1494 = vmul.f32 %v1490, %v1371
    %v1495 = vmul.f32 %v1488, %v1493
    %v1496 = vadd.f32 %v1494, %v1495
    %v1497 = vtanh.pop %v1496
    %v1498 = vmul.f32 %v1492, %v1497
    %v1499 = vadd.f32 %v1374, %v1498
    %v1500 = vmax.f32 %v1375, %v1498
    %v1501 = vpack.c.bf16 %v1498, %v1498
    %v1502 = vld [vmem:[#allocation2 + $0x20] sm:$0xc0]
    %v1503 = vld [vmem:[#allocation2 + $0x28] sm:$0xc0]
    %v1504 = vld [vmem:[#allocation2 + $0x30] sm:$0xc0]
    %v1505 = vld [vmem:[#allocation2 + $0x38] sm:$0xc0]
    %v1510 = vrot.slane %v1502, 6
    %v1511 = vrot.slane %v1503, 6
    %v1512 = vrot.slane %v1504, 6
    %v1513 = vrot.slane %v1505, 6
    %1518 = vmatprep.subr.bf16.mxu0 %v593
    %1519 = vmatpush1.bf16.msra.mxu0 %v592
    %1520 = vmatprep.subr.bf16.mxu0 %v597
    %1521 = vmatpush1.bf16.msra.mxu0 %v596
    %1522 = vmatprep.subr.bf16.mxu0 %v601
    %1523 = vmatpush1.bf16.msra.mxu0 %v600
    %1524 = vmatprep.subr.bf16.mxu0 %v605
    %1525 = vmatpush1.bf16.msra.mxu0 %v604
    %1526 = vmatprep.subr.bf16.mxu0 %v609
    %1527 = vmatpush1.bf16.msra.mxu0 %v608
    %1528 = vmatprep.subr.bf16.mxu0 %v613
    %1529 = vmatpush1.bf16.msra.mxu0 %v612
    %1530 = vmatprep.subr.bf16.mxu0 %v617
    %1531 = vmatpush1.bf16.msra.mxu0 %v616
    %1532 = vmatprep.subr.bf16.mxu0 %v621
    %1533 = vmatpush1.bf16.msra.mxu0 %v620
    %1534 = vmatprep.subr.bf16.mxu0 0
    %1535 = vmatpush1.bf16.msra.mxu0 0
    %1536 = vmatprep.subr.bf16.mxu0 0
    %1537 = vmatpush1.bf16.msra.mxu0 0
    %1538 = vmatprep.subr.bf16.mxu0 0
    %1539 = vmatpush1.bf16.msra.mxu0 0
    %1540 = vmatprep.subr.bf16.mxu0 0
    %1541 = vmatpush1.bf16.msra.mxu0 0
    %1542 = vmatprep.subr.bf16.mxu0 0
    %1543 = vmatpush1.bf16.msra.mxu0 0
    %1544 = vmatprep.subr.bf16.mxu0 0
    %1545 = vmatpush1.bf16.msra.mxu0 0
    %1546 = vmatprep.subr.bf16.mxu0 0
    %1547 = vmatpush1.bf16.msra.mxu0 0
    %1548 = vmatprep.subr.bf16.mxu0 0
    %1549 = vmatpush1.bf16.msra.mxu0 0
    %1550 = vmatprep.mubr.bf16.mxu0 0
    %1551 = vmatmul.mubr.bf16.gmra.mrb[0].mxu0 %v1501
    %v1552 = vpop.f32.mrb[0].mxu0
    %v1553 = vadd.f32 %v1510, %v1552
    %v1554 = vpop.f32.mrb[0].mxu0
    %v1555 = vadd.f32 %v1511, %v1554
    %v1556 = vpop.f32.mrb[0].mxu0
    %v1557 = vpop.f32.mrb[0].mxu0
    %1558 = vdwg.mxu0
    %1559 = vmatprep.subr.bf16.mxu0 %v595
    %1560 = vmatpush1.bf16.msra.mxu0 %v594
    %1561 = vmatprep.subr.bf16.mxu0 %v599
    %1562 = vmatpush1.bf16.msra.mxu0 %v598
    %1563 = vmatprep.subr.bf16.mxu0 %v603
    %1564 = vmatpush1.bf16.msra.mxu0 %v602
    %1565 = vmatprep.subr.bf16.mxu0 %v607
    %1566 = vmatpush1.bf16.msra.mxu0 %v606
    %1567 = vmatprep.subr.bf16.mxu0 %v611
    %1568 = vmatpush1.bf16.msra.mxu0 %v610
    %1569 = vmatprep.subr.bf16.mxu0 %v615
    %1570 = vmatpush1.bf16.msra.mxu0 %v614
    %1571 = vmatprep.subr.bf16.mxu0 %v619
    %1572 = vmatpush1.bf16.msra.mxu0 %v618
    %1573 = vmatprep.subr.bf16.mxu0 %v623
    %1574 = vmatpush1.bf16.msra.mxu0 %v622
    %1575 = vmatprep.subr.bf16.mxu0 0
    %1576 = vmatpush1.bf16.msra.mxu0 0
    %1577 = vmatprep.subr.bf16.mxu0 0
    %1578 = vmatpush1.bf16.msra.mxu0 0
    %1579 = vmatprep.subr.bf16.mxu0 0
    %1580 = vmatpush1.bf16.msra.mxu0 0
    %1581 = vmatprep.subr.bf16.mxu0 0
    %1582 = vmatpush1.bf16.msra.mxu0 0
    %1583 = vmatprep.subr.bf16.mxu0 0
    %1584 = vmatpush1.bf16.msra.mxu0 0
    %1585 = vmatprep.subr.bf16.mxu0 0
    %1586 = vmatpush1.bf16.msra.mxu0 0
    %1587 = vmatprep.subr.bf16.mxu0 0
    %1588 = vmatpush1.bf16.msra.mxu0 0
    %1589 = vmatprep.subr.bf16.mxu0 0
    %1590 = vmatpush1.bf16.msra.mxu0 0
    %1591 = vmatprep.mubr.bf16.mxu0 0
    %1592 = vmatmul.mubr.bf16.gmra.mrb[0].mxu0 %v1501
    %v1593 = vpop.f32.mrb[0].mxu0
    %v1594 = vadd.f32 %v1512, %v1593
    %v1595 = vpop.f32.mrb[0].mxu0
    %v1596 = vadd.f32 %v1513, %v1595
    %v1597 = vpop.f32.mrb[0].mxu0
    %v1598 = vpop.f32.mrb[0].mxu0
    %1599 = vdwg.mxu0
    %v1600 = vxor.u32 %v1553, 2147483648
    %v1601 = vxor.u32 %v1555, 2147483648
    %v1602 = vxor.u32 %v1594, 2147483648
    %v1603 = vmul.f32 %v1600, 1.442695
    %v1604 = vpow.pop %v1603
    %v1605 = vmul.f32 %v1601, 1.442695
    %v1606 = vpow.pop %v1605
    %v1607 = vmul.f32 %v1602, 1.442695
    %v1608 = vpow.pop %v1607
    %v1609 = vadd.f32 %v1604, 1.0
    %v1610 = vadd.f32 %v1606, 1.0
    %v1611 = vadd.f32 %v1608, 1.0
    %v1612 = vrcp.pop %v1609
    %v1613 = vmul.f32 1.0, %v1612
    %v1614 = vrcp.pop %v1610
    %v1615 = vmul.f32 1.0, %v1614
    %v1616 = vrcp.pop %v1611
    %v1617 = vmul.f32 1.0, %v1616
    %v1618 = vtanh.pop %v1596
    %v1619 = vmul.f32 %v1615, %v1496
    %v1620 = vmul.f32 %v1613, %v1618
    %v1621 = vadd.f32 %v1619, %v1620
    %v1622 = vtanh.pop %v1621
    %v1623 = vmul.f32 %v1617, %v1622
    %v1624 = vadd.f32 %v1499, %v1623
    %v1625 = vmax.f32 %v1500, %v1623
    %v1626 = vmul.f32 %v1624, 0.125
    %v1627 = vpack.c.bf16 %v1626, %v1626
    %v1628 = vpack.c.bf16 %v1625, %v1625
    %v1629 = vld [vmem:[%s4] sm:$0xf]
    %v1630 = vld [vmem:[%s4 + $0x4] sm:$0xf]
    %v1631 = vld [vmem:[%s4 + $0x8] sm:$0xf]
    %v1632 = vld [vmem:[%s4 + $0xc] sm:$0xf]
    %v1633 = vld [vmem:[%s4 + $0x10] sm:$0xf]
    %v1634 = vld [vmem:[%s4 + $0x14] sm:$0xf]
    %v1635 = vld [vmem:[%s4 + $0x18] sm:$0xf]
    %v1636 = vld [vmem:[%s4 + $0x1c] sm:$0xf]
    %v1637 = vld [vmem:[%s4 + $0x20] sm:$0xf]
    %v1638 = vld [vmem:[%s4 + $0x24] sm:$0xf]
    %v1639 = vld [vmem:[%s4 + $0x28] sm:$0xf]
    %v1640 = vld [vmem:[%s4 + $0x2c] sm:$0xf]
    %v1641 = vld [vmem:[%s4 + $0x30] sm:$0xf]
    %v1642 = vld [vmem:[%s4 + $0x34] sm:$0xf]
    %v1643 = vld [vmem:[%s4 + $0x38] sm:$0xf]
    %v1644 = vld [vmem:[%s4 + $0x3c] sm:$0xf]
    %v1645 = vld [vmem:[%s4 + $0x40] sm:$0xf]
    %v1646 = vld [vmem:[%s4 + $0x44] sm:$0xf]
    %v1647 = vld [vmem:[%s4 + $0x48] sm:$0xf]
    %v1648 = vld [vmem:[%s4 + $0x4c] sm:$0xf]
    %v1649 = vld [vmem:[%s4 + $0x50] sm:$0xf]
    %v1650 = vld [vmem:[%s4 + $0x54] sm:$0xf]
    %v1651 = vld [vmem:[%s4 + $0x58] sm:$0xf]
    %v1652 = vld [vmem:[%s4 + $0x5c] sm:$0xf]
    %v1653 = vld [vmem:[%s4 + $0x60] sm:$0xf]
    %v1654 = vld [vmem:[%s4 + $0x64] sm:$0xf]
    %v1655 = vld [vmem:[%s4 + $0x68] sm:$0xf]
    %v1656 = vld [vmem:[%s4 + $0x6c] sm:$0xf]
    %v1657 = vld [vmem:[%s4 + $0x70] sm:$0xf]
    %v1658 = vld [vmem:[%s4 + $0x74] sm:$0xf]
    %v1659 = vld [vmem:[%s4 + $0x78] sm:$0xf]
    %v1660 = vld [vmem:[%s4 + $0x7c] sm:$0xf]
    %v1661 = vld [vmem:[%s5] sm:$0x1]
    %v1663 = vlaneseq
    %v1664 = vshrl.u32 %v1663, 7
    %v1665 = vsub.s32 0, %v1664
    %v1666 = vrot.slane %v1661, %v1665
    %v1700 = vunpack.c.l.b16 %v1629
    %v1701 = vunpack.c.l.b16 %v1630
    %v1702 = vunpack.c.l.b16 %v1631
    %v1703 = vunpack.c.l.b16 %v1632
    %v1704 = vunpack.c.l.b16 %v1633
    %v1705 = vunpack.c.l.b16 %v1634
    %v1706 = vunpack.c.l.b16 %v1635
    %v1707 = vunpack.c.l.b16 %v1636
    %v1708 = vunpack.c.l.b16 %v1637
    %v1709 = vunpack.c.l.b16 %v1638
    %v1710 = vunpack.c.l.b16 %v1639
    %v1711 = vunpack.c.l.b16 %v1640
    %v1712 = vunpack.c.l.b16 %v1641
    %v1713 = vunpack.c.l.b16 %v1642
    %v1714 = vunpack.c.l.b16 %v1643
    %v1715 = vunpack.c.l.b16 %v1644
    %v1716 = vunpack.c.l.b16 %v1645
    %v1717 = vunpack.c.l.b16 %v1646
    %v1718 = vunpack.c.l.b16 %v1647
    %v1719 = vunpack.c.l.b16 %v1648
    %v1720 = vunpack.c.l.b16 %v1649
    %v1721 = vunpack.c.l.b16 %v1650
    %v1722 = vunpack.c.l.b16 %v1651
    %v1723 = vunpack.c.l.b16 %v1652
    %v1724 = vunpack.c.l.b16 %v1653
    %v1725 = vunpack.c.l.b16 %v1654
    %v1726 = vunpack.c.l.b16 %v1655
    %v1727 = vunpack.c.l.b16 %v1656
    %v1728 = vunpack.c.l.b16 %v1657
    %v1729 = vunpack.c.l.b16 %v1658
    %v1730 = vunpack.c.l.b16 %v1659
    %v1731 = vunpack.c.l.b16 %v1660
    %v1732 = vpack.c.b16 %v1701, %v1700
    %v1733 = vpack.c.b16 %v1703, %v1702
    %v1734 = vpack.c.b16 %v1705, %v1704
    %v1735 = vpack.c.b16 %v1707, %v1706
    %v1736 = vpack.c.b16 %v1709, %v1708
    %v1737 = vpack.c.b16 %v1711, %v1710
    %v1738 = vpack.c.b16 %v1713, %v1712
    %v1739 = vpack.c.b16 %v1715, %v1714
    %v1740 = vpack.c.b16 %v1717, %v1716
    %v1741 = vpack.c.b16 %v1719, %v1718
    %v1742 = vpack.c.b16 %v1721, %v1720
    %v1743 = vpack.c.b16 %v1723, %v1722
    %v1744 = vpack.c.b16 %v1725, %v1724
    %v1745 = vpack.c.b16 %v1727, %v1726
    %v1746 = vpack.c.b16 %v1729, %v1728
    %v1747 = vpack.c.b16 %v1731, %v1730
    %1764 = vmatprep.subr.bf16.mxu0 0
    %1765 = vmatpush1.bf16.msra.mxu0 %v1732
    %1766 = vmatprep.subr.bf16.mxu0 0
    %1767 = vmatpush1.bf16.msra.mxu0 %v1733
    %1768 = vmatprep.subr.bf16.mxu0 0
    %1769 = vmatpush1.bf16.msra.mxu0 %v1734
    %1770 = vmatprep.subr.bf16.mxu0 0
    %1771 = vmatpush1.bf16.msra.mxu0 %v1735
    %1772 = vmatprep.subr.bf16.mxu0 0
    %1773 = vmatpush1.bf16.msra.mxu0 %v1736
    %1774 = vmatprep.subr.bf16.mxu0 0
    %1775 = vmatpush1.bf16.msra.mxu0 %v1737
    %1776 = vmatprep.subr.bf16.mxu0 0
    %1777 = vmatpush1.bf16.msra.mxu0 %v1738
    %1778 = vmatprep.subr.bf16.mxu0 0
    %1779 = vmatpush1.bf16.msra.mxu0 %v1739
    %1780 = vmatprep.subr.bf16.mxu0 0
    %1781 = vmatpush1.bf16.msra.mxu0 %v1740
    %1782 = vmatprep.subr.bf16.mxu0 0
    %1783 = vmatpush1.bf16.msra.mxu0 %v1741
    %1784 = vmatprep.subr.bf16.mxu0 0
    %1785 = vmatpush1.bf16.msra.mxu0 %v1742
    %1786 = vmatprep.subr.bf16.mxu0 0
    %1787 = vmatpush1.bf16.msra.mxu0 %v1743
    %1788 = vmatprep.subr.bf16.mxu0 0
    %1789 = vmatpush1.bf16.msra.mxu0 %v1744
    %1790 = vmatprep.subr.bf16.mxu0 0
    %1791 = vmatpush1.bf16.msra.mxu0 %v1745
    %1792 = vmatprep.subr.bf16.mxu0 0
    %1793 = vmatpush1.bf16.msra.mxu0 %v1746
    %1794 = vmatprep.subr.bf16.mxu0 0
    %1795 = vmatpush1.bf16.msra.mxu0 %v1747
    %1796 = vmatprep.mubr.bf16.mxu0 %v1628
    %1797 = vmatmul.mubr.bf16.gmra.mrb[0].mxu0 %v1627
    %v1798 = vpop.f32.mrb[0].mxu0
    %v1799 = vadd.f32 %v1666, %v1798
    %v1800 = vpop.f32.mrb[0].mxu0
    %v1801 = vpop.f32.mrb[0].mxu0
    %v1802 = vpop.f32.mrb[0].mxu0
    %1803 = vdwg.mxu0
    %v1804 = vmax.f32 %v1799, 0.0
    %v1805 = vld [vmem:[%s6] sm:$0xff]
    %v1806 = vld [vmem:[%s6 + $0x8] sm:$0xff]
    %v1807 = vld [vmem:[%s6 + $0x10] sm:$0xff]
    %v1808 = vld [vmem:[%s6 + $0x18] sm:$0xff]
    %v1809 = vld [vmem:[%s6 + $0x20] sm:$0xff]
    %v1810 = vld [vmem:[%s6 + $0x28] sm:$0xff]
    %v1811 = vld [vmem:[%s6 + $0x30] sm:$0xff]
    %v1812 = vld [vmem:[%s6 + $0x38] sm:$0xff]
    %v1813 = vld [vmem:[#allocation3] sm:$0x1]
    %v1815 = vlaneseq
    %v1816 = vshrl.u32 %v1815, 7
    %v1817 = vsub.s32 0, %v1816
    %v1818 = vrot.slane %v1813, %v1817
    %vm1820 = vcmask 523264
    %v1822 = vsel %vm1820, %v1804, 0
    %1824 = vmatprep.subr.mxu0 0.0
    %1825 = vmatpush1.msra.mxu0 %v1805
    %1826 = vmatprep.subr.mxu0 0.0
    %1827 = vmatpush1.msra.mxu0 %v1806
    %1828 = vmatprep.subr.mxu0 0.0
    %1829 = vmatpush1.msra.mxu0 %v1807
    %1830 = vmatprep.subr.mxu0 0.0
    %1831 = vmatpush1.msra.mxu0 %v1808
    %1832 = vmatprep.subr.mxu0 0.0
    %1833 = vmatpush1.msra.mxu0 %v1809
    %1834 = vmatprep.subr.mxu0 0.0
    %1835 = vmatpush1.msra.mxu0 %v1810
    %1836 = vmatprep.subr.mxu0 0.0
    %1837 = vmatpush1.msra.mxu0 %v1811
    %1838 = vmatprep.subr.mxu0 0.0
    %1839 = vmatpush1.msra.mxu0 %v1812
    %1840 = vmatprep.subr.mxu0 0.0
    %1841 = vmatpush1.msra.mxu0 0.0
    %1842 = vmatprep.subr.mxu0 0.0
    %1843 = vmatpush1.msra.mxu0 0.0
    %1844 = vmatprep.subr.mxu0 0.0
    %1845 = vmatpush1.msra.mxu0 0.0
    %1846 = vmatprep.subr.mxu0 0.0
    %1847 = vmatpush1.msra.mxu0 0.0
    %1848 = vmatprep.subr.mxu0 0.0
    %1849 = vmatpush1.msra.mxu0 0.0
    %1850 = vmatprep.subr.mxu0 0.0
    %1851 = vmatpush1.msra.mxu0 0.0
    %1852 = vmatprep.subr.mxu0 0.0
    %1853 = vmatpush1.msra.mxu0 0.0
    %1854 = vmatprep.subr.mxu0 0.0
    %1855 = vmatpush1.msra.mxu0 0.0
    %1856 = vmatprep.subr.mxu0 0.0
    %1857 = vmatpush1.msra.mxu0 0.0
    %1858 = vmatprep.subr.mxu0 0.0
    %1859 = vmatpush1.msra.mxu0 0.0
    %1860 = vmatprep.subr.mxu0 0.0
    %1861 = vmatpush1.msra.mxu0 0.0
    %1862 = vmatprep.subr.mxu0 0.0
    %1863 = vmatpush1.msra.mxu0 0.0
    %1864 = vmatprep.subr.mxu0 0.0
    %1865 = vmatpush1.msra.mxu0 0.0
    %1866 = vmatprep.subr.mxu0 0.0
    %1867 = vmatpush1.msra.mxu0 0.0
    %1868 = vmatprep.subr.mxu0 0.0
    %1869 = vmatpush1.msra.mxu0 0.0
    %1870 = vmatprep.subr.mxu0 0.0
    %1871 = vmatpush1.msra.mxu0 0.0
    %1872 = vmatprep.subr.mxu0 0.0
    %1873 = vmatpush1.msra.mxu0 0.0
    %1874 = vmatprep.subr.mxu0 0.0
    %1875 = vmatpush1.msra.mxu0 0.0
    %1876 = vmatprep.subr.mxu0 0.0
    %1877 = vmatpush1.msra.mxu0 0.0
    %1878 = vmatprep.subr.mxu0 0.0
    %1879 = vmatpush1.msra.mxu0 0.0
    %1880 = vmatprep.subr.mxu0 0.0
    %1881 = vmatpush1.msra.mxu0 0.0
    %1882 = vmatprep.subr.mxu0 0.0
    %1883 = vmatpush1.msra.mxu0 0.0
    %1884 = vmatprep.subr.mxu0 0.0
    %1885 = vmatpush1.msra.mxu0 0.0
    %1886 = vmatprep.subr.mxu0 0.0
    %1887 = vmatpush1.msra.mxu0 0.0
    %1888 = vmatprep.mubr.f32.mxu0 0.0
    %1889 = vmatmul.mubr.f32.gmra.mrb[0].mxu0 %v1822
    %v1890 = vpop.f32.mrb[0].mxu0
    %v1891 = vadd.f32 %v1818, %v1890
    %v1892 = vpop.f32.mrb[0].mxu0
    %1893 = vdwg.mxu0
    %v1894 = vxor.u32 %v1891, 2147483648
    %v1895 = vmul.f32 %v1894, 1.442695
    %v1896 = vpow.pop %v1895
    %v1897 = vadd.f32 %v1896, 1.0
    %v1898 = vrcp.pop %v1897
    %v1899 = vmul.f32 1.0, %v1898
    %vm1900 = vcmask 1024
    %1901 = vst.msk [vmem:[%s8] sm:$0x3] %vm1900, %v1899
    // Predicated region
    $region46: #{covid_bilstm_forward.1} parent=1 // pred_check
      _
    $region47: #{covid_bilstm_forward.1} parent=1 // pred_check_branch
      %1903 = sbr.rel (0) target = $region49
    $region48: #{covid_bilstm_forward.1} parent=1 // pred_region
      _
    $region49: #{covid_bilstm_forward.1} parent=1 // pred_fallthru
      _
    // Predicated region
    $region50: #{covid_bilstm_forward.1} parent=1 // pred_check
      _
    $region51: #{covid_bilstm_forward.1} parent=1 // pred_check_branch
      %1905 = sbr.rel (0) target = $region53
    $region52: #{covid_bilstm_forward.1} parent=1 // pred_region
      _
    $region53: #{covid_bilstm_forward.1} parent=1 // pred_fallthru
      _
    %1906 = vsyncpa [#allocation5], 1
    %1907 = vsyncpa [#allocation9], 1
    %1908 = vsyncpa [#allocation6], 1

</llo_original>
